<compile_context>
chip_gen: v7x
topology: tpu7x:2x2x1
jax: 0.10.0
libtpu: 0.0.40
codegen_flags: <defaults>
</compile_context>

<pallas_src>
import numpy as np
import jax
import jax.numpy as jnp
from jax import lax
from jax.experimental import pallas as pl
from jax.experimental.pallas import tpu as pltpu

VISUAL_DIM = 128
EPS = 1e-6  # epsilon of the numerically-stable masked softmax
# TODO(synk): source of `numerical_stability_masked_softmax` was not provided; the
# standard masked-softmax (mask * exp(x*mask - max) / (sum + eps)) variant is used.

VMEM_LIMIT = 32 * 1024 * 1024  # explicit scoped-VMEM cap; safe on v5e/v6e/v7x


# ----------------------------------------------------------------------------
# Kernel 1: per-edge Linear layers + attention scores (tiled over edges)
# ----------------------------------------------------------------------------
def _edge_kernel(vs_ref, vo_ref, vr_ref,
                 wr_ref, br_ref, ws_ref, bs_ref, wo_ref, bo_ref,
                 rel_out_ref, score_out_ref):
    vs = vs_ref[...]                                     # [TE, D] bf16
    vo = vo_ref[...]                                     # [TE, D] bf16
    vr = vr_ref[...]                                     # [TE, D] bf16

    # rel_update_embedding(cat(sub, obj, rel)): single K=3D matmul (fills 256-deep MXU)
    x_rel = jnp.concatenate([vs, vo, vr], axis=1)        # [TE, 3D] bf16
    upd = jnp.dot(x_rel, wr_ref[...], preferred_element_type=jnp.float32) + br_ref[...]
    upd_bf = upd.astype(jnp.bfloat16)

    # visual_joint_trans_sub / _obj: K=2D matmuls
    ts = jnp.dot(jnp.concatenate([vs, upd_bf], axis=1), ws_ref[...],
                 preferred_element_type=jnp.float32) + bs_ref[...]
    to = jnp.dot(jnp.concatenate([vo, upd_bf], axis=1), wo_ref[...],
                 preferred_element_type=jnp.float32) + bo_ref[...]

    inv_sqrt_d = 1.0 / (float(vs.shape[1]) ** 0.5)
    rel_out_ref[...] = upd
    score_out_ref[...] = jnp.sum(ts * to, axis=1, keepdims=True) * inv_sqrt_d


def edge_transform(vs, vo, vr, params, te):
    E_pad, D = vs.shape
    grid = (E_pad // te,)

    wr = params["W_rel"].astype(jnp.bfloat16)            # [3D, D]
    ws = params["W_sub"].astype(jnp.bfloat16)            # [2D, D]
    wo = params["W_obj"].astype(jnp.bfloat16)            # [2D, D]

    edge_spec = pl.BlockSpec((te, D), lambda e: (e, 0))

    def pinned(shape):
        return pl.BlockSpec(shape, lambda e: (0, 0))      # weights resident, DMA'd once

    return pl.pallas_call(
        _edge_kernel,
        out_shape=(jax.ShapeDtypeStruct((E_pad, D), jnp.float32),
                   jax.ShapeDtypeStruct((E_pad, 1), jnp.float32)),
        grid_spec=pltpu.PrefetchScalarGridSpec(
            num_scalar_prefetch=0,
            grid=grid,
            in_specs=[edge_spec, edge_spec, edge_spec,
                      pinned((3 * D, D)), pinned((1, D)),
                      pinned((2 * D, D)), pinned((1, D)),
                      pinned((2 * D, D)), pinned((1, D))],
            out_specs=(edge_spec, pl.BlockSpec((te, 1), lambda e: (e, 0)))),
        compiler_params=pltpu.CompilerParams(
            dimension_semantics=("parallel",),
            vmem_limit_bytes=VMEM_LIMIT),
    )(vs, vo, vr, wr, params["b_rel"], ws, params["b_sub"], wo, params["b_obj"])


# ----------------------------------------------------------------------------
# Kernel 2: masked softmaxes + edge-list aggregation + ctx embedding + update
# ----------------------------------------------------------------------------
def _agg_kernel(score_ref, mask_ref, vf_ref, rel_ref, a_sub_ref, a_obj_ref,
                upd_mask_ref, wc_ref, bc_ref, out_ref):
    s = score_ref[...]                        # [N, N] f32 dense weight_atten
    m = mask_ref[...]                         # [N, N] f32 (conn_map >= 0)
    masked = s * m

    # masked softmax along dim=1 (rows) -> weight_sub
    rowmax = jnp.max(masked, axis=1, keepdims=True)
    e1 = jnp.exp(masked - rowmax) * m
    w_sub = e1 / (jnp.sum(e1, axis=1, keepdims=True) + EPS)
    # masked softmax along dim=0 (cols) -> weight_obj
    colmax = jnp.max(masked, axis=0, keepdims=True)
    e0 = jnp.exp(masked - colmax) * m
    w_obj = e0 / (jnp.sum(e0, axis=0, keepdims=True) + EPS)

    vf = vf_ref[...]                          # [N, D] f32
    vf_bf = vf.astype(jnp.bfloat16)
    w_sub_bf = w_sub.astype(jnp.bfloat16)
    w_obj_bf = w_obj.astype(jnp.bfloat16)

    # feat channels: sum_j w_sub[n,j] vf[j] + sum_i w_obj[i,n] vf[i]
    # (dim-0 contraction instead of an explicit [N,N] transpose)
    feat_part = (jnp.dot(w_sub_bf, vf_bf, preferred_element_type=jnp.float32)
                 + lax.dot_general(w_obj_bf, vf_bf,
                                   dimension_numbers=(((0,), (0,)), ((), ())),
                                   preferred_element_type=jnp.float32))

    # rel channels in edge-list form (no dense [N,N,D]):
    #   rel_part[n] = sum_{e: sub_e=n} w_sub[n, obj_e] * rel[e]
    #               + sum_{e: obj_e=n} w_obj[sub_e, n] * rel[e]
    a_sub = a_sub_ref[...]                    # [N, Ep] bf16 one-hot (1 iff sub_e = n)
    a_obj = a_obj_ref[...]                    # [N, Ep] bf16 one-hot (1 iff obj_e = n)
    g_sub = jnp.dot(w_sub_bf, a_obj, preferred_element_type=jnp.float32)        # [N,Ep]: w_sub[n, obj_e]
    g_obj = lax.dot_general(w_obj_bf, a_sub,
                            dimension_numbers=(((0,), (0,)), ((), ())),
                            preferred_element_type=jnp.float32)                 # [N,Ep]: w_obj[sub_e, n]
    p_sub = (a_sub.astype(jnp.float32) * g_sub).astype(jnp.bfloat16)            # zero off-edge
    p_obj = (a_obj.astype(jnp.float32) * g_obj).astype(jnp.bfloat16)
    rel = rel_ref[...]                        # [Ep, D] bf16 (updated_rel_feat)
    rel_part = (jnp.dot(p_sub, rel, preferred_element_type=jnp.float32)
                + jnp.dot(p_obj, rel, preferred_element_type=jnp.float32))

    # visual_ctx_embedding(cat(feat_part, rel_part)): single K=2D matmul
    ctx_in = jnp.concatenate([feat_part, rel_part], axis=1).astype(jnp.bfloat16)
    ctx = jnp.dot(ctx_in, wc_ref[...], preferred_element_type=jnp.float32) + bc_ref[...]

    # target-phrase nodes get vf + ctx, the rest stay vf
    out_ref[...] = vf + upd_mask_ref[...] * ctx


def aggregate(score_dense, mask, visual_feat, rel_bf, a_sub, a_obj, update_mask, params):
    N, D = visual_feat.shape
    wc = params["W_ctx"].astype(jnp.bfloat16)
    vmem = pl.BlockSpec(memory_space=pltpu.MemorySpace.VMEM)
    args = (score_dense, mask, visual_feat, rel_bf, a_sub, a_obj, update_mask,
            wc, params["b_ctx"])
    return pl.pallas_call(
        _agg_kernel,
        out_shape=jax.ShapeDtypeStruct((N, D), jnp.float32),
        in_specs=[vmem] * len(args),
        out_specs=vmem,
        compiler_params=pltpu.CompilerParams(vmem_limit_bytes=VMEM_LIMIT),
    )(*args)


# ----------------------------------------------------------------------------
# Module wrapper
# ----------------------------------------------------------------------------
def init_params(key, D):
    ks = jax.random.split(key, 8)
    scale = 0.02
    return {
        "W_rel": jax.random.normal(ks[0], (3 * D, D), jnp.float32) * scale,
        "b_rel": jax.random.normal(ks[1], (1, D), jnp.float32) * scale,
        "W_sub": jax.random.normal(ks[2], (2 * D, D), jnp.float32) * scale,
        "b_sub": jax.random.normal(ks[3], (1, D), jnp.float32) * scale,
        "W_obj": jax.random.normal(ks[4], (2 * D, D), jnp.float32) * scale,
        "b_obj": jax.random.normal(ks[5], (1, D), jnp.float32) * scale,
        "W_ctx": jax.random.normal(ks[6], (2 * D, D), jnp.float32) * scale,
        "b_ctx": jax.random.normal(ks[7], (1, D), jnp.float32) * scale,
    }


def visual_scene_graph_v1(params, visual_feat, rel_visual_feat, conn_map_np,
                          topN_boxes_scores, target_id, te_max=512):
    num_phrase, topN = topN_boxes_scores.shape
    N, D = visual_feat.shape

    # host-side edge extraction (the torch module also does this with .cpu().numpy())
    sub_ind, obj_ind = np.where(conn_map_np >= 0)
    E = int(sub_ind.shape[0])

    # edge-tile sizing: sublane multiple of 8; tail handled by zero-padding E
    assert te_max % 8 == 0
    if E <= te_max:
        te = max(8, pl.cdiv(max(E, 1), 8) * 8)
        E_pad = te
    else:
        te = te_max
        E_pad = pl.cdiv(E, te) * te
    pad = E_pad - E

    vs = visual_feat[sub_ind].astype(jnp.bfloat16)
    vo = visual_feat[obj_ind].astype(jnp.bfloat16)
    vr = rel_visual_feat.astype(jnp.bfloat16)
    if pad:
        zpad = ((0, pad), (0, 0))
        vs, vo, vr = jnp.pad(vs, zpad), jnp.pad(vo, zpad), jnp.pad(vr, zpad)

    rel_pad, score_pad = edge_transform(vs, vo, vr, params, te)
    updated_rel_feat = rel_pad[:E]
    scores = score_pad[:E, 0]

    mask = jnp.asarray((conn_map_np >= 0).astype(np.float32))
    score_dense = jnp.zeros((N, N), jnp.float32).at[sub_ind, obj_ind].set(scores)

    # one-hot edge incidence matrices; padded edge columns are zero, so padded
    # edges contribute nothing in the aggregation kernel.
    a_sub_np = np.zeros((N, E_pad), np.float32)
    a_obj_np = np.zeros((N, E_pad), np.float32)
    a_sub_np[sub_ind, np.arange(E)] = 1.0
    a_obj_np[obj_ind, np.arange(E)] = 1.0
    a_sub = jnp.asarray(a_sub_np, dtype=jnp.bfloat16)
    a_obj = jnp.asarray(a_obj_np, dtype=jnp.bfloat16)

    rel_bf = rel_pad.astype(jnp.bfloat16)

    update_mask = np.zeros((N, 1), np.float32)
    update_mask[target_id * topN:(target_id + 1) * topN] = 1.0
    update_mask = jnp.asarray(update_mask)

    update_visual_feat = aggregate(score_dense, mask, visual_feat, rel_bf,
                                   a_sub, a_obj, update_mask, params)
    return updated_rel_feat, update_visual_feat


# ----------------------------------------------------------------------------
# Pure-JAX reference (mirrors the torch forward) for a sanity check
# ----------------------------------------------------------------------------
def _masked_softmax_ref(vec, mask, axis):
    m = mask.astype(jnp.float32)
    masked = vec * m
    mx = jnp.max(masked, axis=axis, keepdims=True)
    e = jnp.exp(masked - mx) * m
    return e / (jnp.sum(e, axis=axis, keepdims=True) + EPS)


def reference(params, visual_feat, rel_visual_feat, conn_map_np,
              topN_boxes_scores, target_id):
    num_phrase, topN = topN_boxes_scores.shape
    N, D = visual_feat.shape
    sub_ind, obj_ind = np.where(conn_map_np >= 0)
    vs, vo = visual_feat[sub_ind], visual_feat[obj_ind]

    upd = jnp.concatenate([vs, vo, rel_visual_feat], 1) @ params["W_rel"] + params["b_rel"]
    ts = jnp.concatenate([vs, upd], 1) @ params["W_sub"] + params["b_sub"]
    to = jnp.concatenate([vo, upd], 1) @ params["W_obj"] + params["b_obj"]
    score = jnp.sum(ts * to, 1) / (D ** 0.5)

    watt = jnp.zeros((N, N), jnp.float32).at[sub_ind, obj_ind].set(score)
    mask = jnp.asarray(conn_map_np >= 0)
    w_sub = _masked_softmax_ref(watt, mask, 1)
    w_obj = _masked_softmax_ref(watt, mask, 0)

    rel_dense = jnp.zeros((N, N, D), jnp.float32).at[sub_ind, obj_ind].set(upd)
    feat_part = w_sub @ visual_feat + w_obj.T @ visual_feat
    rel_part = jnp.sum(w_sub[:, :, None] * rel_dense, 1) + jnp.sum(w_obj[:, :, None] * rel_dense, 0)
    ctx = jnp.concatenate([feat_part, rel_part], 1) @ params["W_ctx"] + params["b_ctx"]

    update_mask = np.zeros((N, 1), np.float32)
    update_mask[target_id * topN:(target_id + 1) * topN] = 1.0
    out = visual_feat + jnp.asarray(update_mask) * ctx
    return upd, out


# ----------------------------------------------------------------------------
if __name__ == "__main__":
    D = VISUAL_DIM
    num_phrase, topN = 3, 7
    N = num_phrase * topN
    target_id = 1

    # deterministic connectivity: edges between boxes of different phrases
    conn_map_np = -np.ones((N, N), dtype=np.int32)
    eid = 0
    for si in range(N):
        for oi in range(N):
            if si // topN != oi // topN:
                conn_map_np[si, oi] = eid
                eid += 1
    E = int((conn_map_np >= 0).sum())          # 294 edges

    key = jax.random.PRNGKey(0)
    kp, k1, k2, k3 = jax.random.split(key, 4)
    params = init_params(kp, D)
    visual_feat = jax.random.normal(k1, (N, D), jnp.float32)
    rel_visual_feat = jax.random.normal(k2, (E, D), jnp.float32)
    topN_boxes_scores = jax.random.uniform(k3, (num_phrase, topN), jnp.float32)

    # te_max=128 so the small demo exercises the multi-tile + padded-tail edge grid
    upd_rel, upd_vf = visual_scene_graph_v1(
        params, visual_feat, rel_visual_feat, conn_map_np, topN_boxes_scores,
        target_id, te_max=128)
    jax.block_until_ready((upd_rel, upd_vf))

    ref_rel, ref_vf = reference(
        params, visual_feat, rel_visual_feat, conn_map_np, topN_boxes_scores, target_id)
    np.testing.assert_allclose(np.asarray(upd_rel), np.asarray(ref_rel), rtol=2e-2, atol=2e-2)
    np.testing.assert_allclose(np.asarray(upd_vf), np.asarray(ref_vf), rtol=2e-2, atol=2e-2)

    print("KERNEL_OK")
</pallas_src>

<mosaic_0001>
module attributes {stable_mosaic.version = 11 : i64} {
  func.func @_edge_kernel(%arg0: i32, %arg1: memref<128x128xbf16, #tpu.memory_space<vmem>>, %arg2: memref<128x128xbf16, #tpu.memory_space<vmem>>, %arg3: memref<128x128xbf16, #tpu.memory_space<vmem>>, %arg4: memref<384x128xbf16, #tpu.memory_space<vmem>>, %arg5: memref<1x128xf32, #tpu.memory_space<vmem>>, %arg6: memref<256x128xbf16, #tpu.memory_space<vmem>>, %arg7: memref<1x128xf32, #tpu.memory_space<vmem>>, %arg8: memref<256x128xbf16, #tpu.memory_space<vmem>>, %arg9: memref<1x128xf32, #tpu.memory_space<vmem>>, %arg10: memref<128x128xf32, #tpu.memory_space<vmem>>, %arg11: memref<128x1xf32, #tpu.memory_space<vmem>>) attributes {dimension_semantics = [#tpu.dimension_semantics<parallel>], iteration_bounds = array<i64: 3>, scalar_prefetch = 0 : i64, scratch_operands = 0 : i64, tpu.core_type = #tpu.core_type<tc>, window_params = [{transform_indices = @transform_0, window_bounds = array<i64: 128, 128>}, {transform_indices = @transform_1, window_bounds = array<i64: 128, 128>}, {transform_indices = @transform_2, window_bounds = array<i64: 128, 128>}, {pipeline_mode = #tpu.pipeline_mode<synchronous>, transform_indices = @transform_3, window_bounds = array<i64: 384, 128>}, {pipeline_mode = #tpu.pipeline_mode<synchronous>, transform_indices = @transform_4, window_bounds = array<i64: 1, 128>}, {pipeline_mode = #tpu.pipeline_mode<synchronous>, transform_indices = @transform_5, window_bounds = array<i64: 256, 128>}, {pipeline_mode = #tpu.pipeline_mode<synchronous>, transform_indices = @transform_6, window_bounds = array<i64: 1, 128>}, {pipeline_mode = #tpu.pipeline_mode<synchronous>, transform_indices = @transform_7, window_bounds = array<i64: 256, 128>}, {pipeline_mode = #tpu.pipeline_mode<synchronous>, transform_indices = @transform_8, window_bounds = array<i64: 1, 128>}, {transform_indices = @transform_9, window_bounds = array<i64: 128, 128>}, {transform_indices = @transform_10, window_bounds = array<i64: 128, 1>}]} {
    %c0 = arith.constant 0 : index
    %c0_0 = arith.constant 0 : index
    %0 = vector.load %arg1[%c0, %c0_0] : memref<128x128xbf16, #tpu.memory_space<vmem>>, vector<128x128xbf16>
    %c0_1 = arith.constant 0 : index
    %c0_2 = arith.constant 0 : index
    %1 = vector.load %arg2[%c0_1, %c0_2] : memref<128x128xbf16, #tpu.memory_space<vmem>>, vector<128x128xbf16>
    %c0_3 = arith.constant 0 : index
    %c0_4 = arith.constant 0 : index
    %2 = vector.load %arg3[%c0_3, %c0_4] : memref<128x128xbf16, #tpu.memory_space<vmem>>, vector<128x128xbf16>
    %3 = tpu.concatenate %0, %1, %2 in 1 : vector<128x128xbf16>, vector<128x128xbf16>, vector<128x128xbf16> -> vector<128x384xbf16>
    %c0_5 = arith.constant 0 : index
    %c0_6 = arith.constant 0 : index
    %4 = vector.load %arg4[%c0_5, %c0_6] : memref<384x128xbf16, #tpu.memory_space<vmem>>, vector<384x128xbf16>
    %cst = arith.constant dense<0.000000e+00> : vector<128x128xf32>
    %5 = tpu.matmul %3, %4, %cst {dimension_numbers = #tpu.dot_dimension_numbers<[1], [0], [0], [1], [0, 0, 1, 1], [], []>} : vector<128x384xbf16>, vector<384x128xbf16>, vector<128x128xf32> -> vector<128x128xf32>
    %c0_7 = arith.constant 0 : index
    %c0_8 = arith.constant 0 : index
    %6 = vector.load %arg5[%c0_7, %c0_8] : memref<1x128xf32, #tpu.memory_space<vmem>>, vector<1x128xf32>
    %7 = vector.broadcast %6 : vector<1x128xf32> to vector<128x128xf32>
    %8 = arith.addf %5, %7 : vector<128x128xf32>
    %9 = arith.truncf %8 : vector<128x128xf32> to vector<128x128xbf16>
    %10 = tpu.concatenate %0, %9 in 1 : vector<128x128xbf16>, vector<128x128xbf16> -> vector<128x256xbf16>
    %c0_9 = arith.constant 0 : index
    %c0_10 = arith.constant 0 : index
    %11 = vector.load %arg6[%c0_9, %c0_10] : memref<256x128xbf16, #tpu.memory_space<vmem>>, vector<256x128xbf16>
    %cst_11 = arith.constant dense<0.000000e+00> : vector<128x128xf32>
    %12 = tpu.matmul %10, %11, %cst_11 {dimension_numbers = #tpu.dot_dimension_numbers<[1], [0], [0], [1], [0, 0, 1, 1], [], []>} : vector<128x256xbf16>, vector<256x128xbf16>, vector<128x128xf32> -> vector<128x128xf32>
    %c0_12 = arith.constant 0 : index
    %c0_13 = arith.constant 0 : index
    %13 = vector.load %arg7[%c0_12, %c0_13] : memref<1x128xf32, #tpu.memory_space<vmem>>, vector<1x128xf32>
    %14 = vector.broadcast %13 : vector<1x128xf32> to vector<128x128xf32>
    %15 = arith.addf %12, %14 : vector<128x128xf32>
    %16 = tpu.concatenate %1, %9 in 1 : vector<128x128xbf16>, vector<128x128xbf16> -> vector<128x256xbf16>
    %c0_14 = arith.constant 0 : index
    %c0_15 = arith.constant 0 : index
    %17 = vector.load %arg8[%c0_14, %c0_15] : memref<256x128xbf16, #tpu.memory_space<vmem>>, vector<256x128xbf16>
    %cst_16 = arith.constant dense<0.000000e+00> : vector<128x128xf32>
    %18 = tpu.matmul %16, %17, %cst_16 {dimension_numbers = #tpu.dot_dimension_numbers<[1], [0], [0], [1], [0, 0, 1, 1], [], []>} : vector<128x256xbf16>, vector<256x128xbf16>, vector<128x128xf32> -> vector<128x128xf32>
    %c0_17 = arith.constant 0 : index
    %c0_18 = arith.constant 0 : index
    %19 = vector.load %arg9[%c0_17, %c0_18] : memref<1x128xf32, #tpu.memory_space<vmem>>, vector<1x128xf32>
    %20 = vector.broadcast %19 : vector<1x128xf32> to vector<128x128xf32>
    %21 = arith.addf %18, %20 : vector<128x128xf32>
    %c0_19 = arith.constant 0 : index
    %c0_20 = arith.constant 0 : index
    %22 = vector.load %arg10[%c0_19, %c0_20] : memref<128x128xf32, #tpu.memory_space<vmem>>, vector<128x128xf32>
    tpu.vector_store %arg10[%c0_19, %c0_20], %8 {strides = array<i32>} : memref<128x128xf32, #tpu.memory_space<vmem>>, vector<128x128xf32>,
    %23 = arith.mulf %15, %21 : vector<128x128xf32>
    %cst_21 = arith.constant dense<0.000000e+00> : vector<128xf32>
    %24 = vector.multi_reduction <add>, %23, %cst_21 [1] : vector<128x128xf32> to vector<128xf32>
    %25 = vector.shape_cast %24 : vector<128xf32> to vector<128x1xf32>
    %cst_22 = arith.constant 0.0883883461 : f32
    %26 = vector.broadcast %cst_22 : f32 to vector<128x1xf32>
    %27 = arith.mulf %25, %26 : vector<128x1xf32>
    %c0_23 = arith.constant 0 : index
    %c0_24 = arith.constant 0 : index
    %28 = vector.load %arg11[%c0_23, %c0_24] : memref<128x1xf32, #tpu.memory_space<vmem>>, vector<128x1xf32>
    tpu.vector_store %arg11[%c0_23, %c0_24], %27 {strides = array<i32>} : memref<128x1xf32, #tpu.memory_space<vmem>>, vector<128x1xf32>,
    return
  }
  func.func @transform_0(%arg0: i32) -> (i32, i32) {
    %c0_i32 = arith.constant 0 : i32
    %c0_i32_0 = arith.constant 0 : i32
    return %arg0, %c0_i32 : i32, i32
  }
  func.func @transform_1(%arg0: i32) -> (i32, i32) {
    %c0_i32 = arith.constant 0 : i32
    %c0_i32_0 = arith.constant 0 : i32
    return %arg0, %c0_i32 : i32, i32
  }
  func.func @transform_2(%arg0: i32) -> (i32, i32) {
    %c0_i32 = arith.constant 0 : i32
    %c0_i32_0 = arith.constant 0 : i32
    return %arg0, %c0_i32 : i32, i32
  }
  func.func @transform_3(%arg0: i32) -> (i32, i32) {
    %c0_i32 = arith.constant 0 : i32
    %c0_i32_0 = arith.constant 0 : i32
    %c0_i32_1 = arith.constant 0 : i32
    return %c0_i32, %c0_i32_0 : i32, i32
  }
  func.func @transform_4(%arg0: i32) -> (i32, i32) {
    %c0_i32 = arith.constant 0 : i32
    %c0_i32_0 = arith.constant 0 : i32
    %c0_i32_1 = arith.constant 0 : i32
    return %c0_i32, %c0_i32_0 : i32, i32
  }
  func.func @transform_5(%arg0: i32) -> (i32, i32) {
    %c0_i32 = arith.constant 0 : i32
    %c0_i32_0 = arith.constant 0 : i32
    %c0_i32_1 = arith.constant 0 : i32
    return %c0_i32, %c0_i32_0 : i32, i32
  }
  func.func @transform_6(%arg0: i32) -> (i32, i32) {
    %c0_i32 = arith.constant 0 : i32
    %c0_i32_0 = arith.constant 0 : i32
    %c0_i32_1 = arith.constant 0 : i32
    return %c0_i32, %c0_i32_0 : i32, i32
  }
  func.func @transform_7(%arg0: i32) -> (i32, i32) {
    %c0_i32 = arith.constant 0 : i32
    %c0_i32_0 = arith.constant 0 : i32
    %c0_i32_1 = arith.constant 0 : i32
    return %c0_i32, %c0_i32_0 : i32, i32
  }
  func.func @transform_8(%arg0: i32) -> (i32, i32) {
    %c0_i32 = arith.constant 0 : i32
    %c0_i32_0 = arith.constant 0 : i32
    %c0_i32_1 = arith.constant 0 : i32
    return %c0_i32, %c0_i32_0 : i32, i32
  }
  func.func @transform_9(%arg0: i32) -> (i32, i32) {
    %c0_i32 = arith.constant 0 : i32
    %c0_i32_0 = arith.constant 0 : i32
    return %arg0, %c0_i32 : i32, i32
  }
  func.func @transform_10(%arg0: i32) -> (i32, i32) {
    %c0_i32 = arith.constant 0 : i32
    %c0_i32_0 = arith.constant 0 : i32
    return %arg0, %c0_i32 : i32, i32
  }
}

</mosaic_0001>

<llo_original>
// kernel: tpu_custom_call.1
$region0: #{tpu_custom_call.1}
  #allocation0 [shape = 'u32[]', space=smem, size = 0x4, offset = 0x4, fixed_abs, tag = 'smem constant byte address 0x4 - core index']
  #allocation1 [shape = 'u32[144,128]{1,0:T(1,128)}', space=vmem, size = 0x12000, scoped, tag = 'internal scratch']
  %s0 = inlined_call_operand.hbm [shape: bf16[384,128], index: 0, kind: input, shape index: {}]
  %s1 = inlined_call_operand.hbm [shape: bf16[384,128], index: 1, kind: input, shape index: {}]
  %s2 = inlined_call_operand.hbm [shape: bf16[384,128], index: 2, kind: input, shape index: {}]
  %s3 = inlined_call_operand.hbm [shape: bf16[384,128], index: 3, kind: input, shape index: {}]
  %s4 = inlined_call_operand.vmem [shape: f32[1,128], index: 4, kind: input, shape index: {}]
  %s5 = inlined_call_operand.hbm [shape: bf16[256,128], index: 5, kind: input, shape index: {}]
  %s6 = inlined_call_operand.vmem [shape: f32[1,128], index: 6, kind: input, shape index: {}]
  %s7 = inlined_call_operand.hbm [shape: bf16[256,128], index: 7, kind: input, shape index: {}]
  %s8 = inlined_call_operand.vmem [shape: f32[1,128], index: 8, kind: input, shape index: {}]
  %s9 = inlined_call_operand.hbm [shape: f32[384,128], index: 9, kind: output, shape index: {0}]
  %s10 = inlined_call_operand.vmem [shape: f32[384,1], index: 10, kind: output, shape index: {1}]
  %11 = xla_tuple %s9, %s10
  %s12 = sld [smem:[#allocation0]]
  $region101: #{tpu_custom_call.1} parent=0
    _
  %s14 = ssub.s32 1, %s12
  %s15 = scalar_select 0, %s14, %s12
  $region1: #{tpu_custom_call.1} parent=0
    #allocation2 [shape = 'u8[65536]{0}', space=vmem, size = 0x10000, scoped, tag = 'input window, operand 0']
    #allocation3 [shape = 's32[2]{0}', space=sflag, size = 0x8, scoped, tag = 'scoped memory for tpu_custom_call.1']
    #allocation4 [shape = 's32[2]{0}', space=sflag, size = 0x8, scoped, tag = 'scoped memory for tpu_custom_call.1']
    #allocation5 [shape = 'u8[65536]{0}', space=vmem, size = 0x10000, scoped, tag = 'input window, operand 1']
    #allocation6 [shape = 's32[2]{0}', space=sflag, size = 0x8, scoped, tag = 'scoped memory for tpu_custom_call.1']
    #allocation7 [shape = 'u8[65536]{0}', space=vmem, size = 0x10000, scoped, tag = 'input window, operand 2']
    #allocation8 [shape = 'u8[98304]{0}', space=vmem, size = 0x18000, scoped, tag = 'input window, operand 3, single buffered']
    #allocation9 [shape = 's32[1]{0}', space=sflag, size = 0x4, scoped, tag = 'scoped memory for tpu_custom_call.1']
    #allocation10 [shape = 'u8[65536]{0}', space=vmem, size = 0x10000, scoped, tag = 'input window, operand 5, single buffered']
    #allocation11 [shape = 'u8[65536]{0}', space=vmem, size = 0x10000, scoped, tag = 'input window, operand 7, single buffered']
    #allocation12 [shape = 's32[1]{0}', space=sflag, size = 0x4, scoped, tag = 'scoped memory for tpu_custom_call.1']
    #allocation13 [shape = 'u8[131072]{0}', space=vmem, size = 0x20000, scoped, tag = 'output window, operand 0']
    %16 = vsyncpa [#allocation3], 0
    %s17 = scalar_lea.sflag [#allocation3], 1
    %18 = vsyncpa %s17, 0
    %19 = vsyncpa [#allocation6], 0
    %s20 = scalar_lea.sflag [#allocation6], 1
    %21 = vsyncpa %s20, 0
    %22 = vsyncpa [#allocation9], 0
    %23 = vsyncpa [#allocation12], 0
    %24 = vsyncpa [#allocation4], 0
    %s25 = scalar_lea.sflag [#allocation4], 1
    %26 = vsyncpa %s25, 0
    loop: start=0, step=1, limit=5
    $region2: #{tpu_custom_call.1} parent=1 // loop_pre_header
      _
    $region3: #{tpu_custom_call.1} parent=1 // loop_header
      %s28 = sphi 0, %s32
      %p29 = scmp.ge.s32.totalorder %s28, 5
      %s38 = sphi 0, %s40
      %s41 = sphi 0, %s38
      %s42 = sphi 0, %s41
      %s58 = sphi 0, %s42
      %s64 = sphi 0, %s66
      %s67 = sphi 0, %s64
      %s68 = sphi 0, %s67
      %s84 = sphi 0, %s68
      %s90 = sphi 0, %s92
      %s93 = sphi 0, %s90
      %s94 = sphi 0, %s93
      %s110 = sphi 0, %s94
      %s114 = sphi 0, %s114
      %s116 = sphi 0, %s114
      %s117 = sphi 0, %s116
      %s131 = sphi 0, %s117
      %s135 = sphi 0, %s135
      %s137 = sphi 0, %s135
      %s138 = sphi 0, %s137
      %s152 = sphi 0, %s138
      %s156 = sphi 0, %s156
      %s158 = sphi 0, %s156
      %s159 = sphi 0, %s158
      %s173 = sphi 0, %s159
      %s177 = sphi 0, %s177
      %s179 = sphi 0, %s177
      %s180 = sphi 0, %s179
      %s194 = sphi 0, %s180
      %s198 = sphi 0, %s198
      %s200 = sphi 0, %s198
      %s201 = sphi 0, %s200
      %s215 = sphi 0, %s201
      %s219 = sphi 0, %s219
      %s221 = sphi 0, %s219
      %s222 = sphi 0, %s221
      %s236 = sphi 0, %s222
      %s242 = sphi 0, %s244
      %s245 = sphi 0, %s242
      %s246 = sphi 0, %s245
      %s262 = sphi 0, %s246
      %s268 = sphi 0, %s270
      %s271 = sphi 0, %s268
      %s272 = sphi 0, %s271
      %s288 = sphi 0, %s272
    $region4: #{tpu_custom_call.1} parent=1 // loop_header_branch
      %31 = sbr.rel (%p29) target = $region8
    $region5: #{tpu_custom_call.1} parent=1 // loop_body
      %s33 = ssub.s32 %s28, 1
      %s34 = ssub.s32 %s28, 2
      %s35 = sadd.s32 %s28, 1
      %s36 = ssub.s32 %s28, %s35
      %p37 = scmp.eq.s32.totalorder %s36, 0
      %s39 = sadd.s32 %s38, 1
      %s40 = scalar_select %p37, %s38, %s39
      %p43 = pneg %p37
      %p44 = scmp.eq.s32.totalorder %s28, 2
      %p45 = por %p43, %p44
      %p46 = scmp.ne.s32.totalorder %s38, %s41
      %p47 = scmp.eq.s32.totalorder %s28, 0
      %p48 = por %p46, %p47
      %p49 = scmp.ne.s32.totalorder %s38, %s41
      %p50 = scmp.eq.s32.totalorder %s33, 2
      %p51 = por %p49, %p50
      %p52 = scmp.ne.s32.totalorder %s41, %s42
      %p53 = scmp.eq.s32.totalorder %s33, 0
      %p54 = por %p52, %p53
      %p55 = scmp.ne.s32.totalorder %s41, %s42
      %p56 = scmp.eq.s32.totalorder %s34, 2
      %p57 = por %p55, %p56
      %p59 = scmp.ne.s32.totalorder %s42, %s58
      %p60 = scmp.eq.s32.totalorder %s34, 0
      %p61 = por %p59, %p60
      %s62 = ssub.s32 %s28, %s35
      %p63 = scmp.eq.s32.totalorder %s62, 0
      %s65 = sadd.s32 %s64, 1
      %s66 = scalar_select %p63, %s64, %s65
      %p69 = pneg %p63
      %p70 = scmp.eq.s32.totalorder %s28, 2
      %p71 = por %p69, %p70
      %p72 = scmp.ne.s32.totalorder %s64, %s67
      %p73 = scmp.eq.s32.totalorder %s28, 0
      %p74 = por %p72, %p73
      %p75 = scmp.ne.s32.totalorder %s64, %s67
      %p76 = scmp.eq.s32.totalorder %s33, 2
      %p77 = por %p75, %p76
      %p78 = scmp.ne.s32.totalorder %s67, %s68
      %p79 = scmp.eq.s32.totalorder %s33, 0
      %p80 = por %p78, %p79
      %p81 = scmp.ne.s32.totalorder %s67, %s68
      %p82 = scmp.eq.s32.totalorder %s34, 2
      %p83 = por %p81, %p82
      %p85 = scmp.ne.s32.totalorder %s68, %s84
      %p86 = scmp.eq.s32.totalorder %s34, 0
      %p87 = por %p85, %p86
      %s88 = ssub.s32 %s28, %s35
      %p89 = scmp.eq.s32.totalorder %s88, 0
      %s91 = sadd.s32 %s90, 1
      %s92 = scalar_select %p89, %s90, %s91
      %p95 = pneg %p89
      %p96 = scmp.eq.s32.totalorder %s28, 2
      %p97 = por %p95, %p96
      %p98 = scmp.ne.s32.totalorder %s90, %s93
      %p99 = scmp.eq.s32.totalorder %s28, 0
      %p100 = por %p98, %p99
      %p101 = scmp.ne.s32.totalorder %s90, %s93
      %p102 = scmp.eq.s32.totalorder %s33, 2
      %p103 = por %p101, %p102
      %p104 = scmp.ne.s32.totalorder %s93, %s94
      %p105 = scmp.eq.s32.totalorder %s33, 0
      %p106 = por %p104, %p105
      %p107 = scmp.ne.s32.totalorder %s93, %s94
      %p108 = scmp.eq.s32.totalorder %s34, 2
      %p109 = por %p107, %p108
      %p111 = scmp.ne.s32.totalorder %s94, %s110
      %p112 = scmp.eq.s32.totalorder %s34, 0
      %p113 = por %p111, %p112
      %s115 = sadd.s32 %s114, 1
      %p118 = scmp.eq.s32.totalorder %s28, 2
      %p119 = scmp.ne.s32.totalorder %s114, %s116
      %p120 = scmp.eq.s32.totalorder %s28, 0
      %p121 = por %p119, %p120
      %p122 = scmp.ne.s32.totalorder %s114, %s116
      %p123 = scmp.eq.s32.totalorder %s33, 2
      %p124 = por %p122, %p123
      %p125 = scmp.ne.s32.totalorder %s116, %s117
      %p126 = scmp.eq.s32.totalorder %s33, 0
      %p127 = por %p125, %p126
      %p128 = scmp.ne.s32.totalorder %s116, %s117
      %p129 = scmp.eq.s32.totalorder %s34, 2
      %p130 = por %p128, %p129
      %p132 = scmp.ne.s32.totalorder %s117, %s131
      %p133 = scmp.eq.s32.totalorder %s34, 0
      %p134 = por %p132, %p133
      %s136 = sadd.s32 %s135, 1
      %p139 = scmp.eq.s32.totalorder %s28, 2
      %p140 = scmp.ne.s32.totalorder %s135, %s137
      %p141 = scmp.eq.s32.totalorder %s28, 0
      %p142 = por %p140, %p141
      %p143 = scmp.ne.s32.totalorder %s135, %s137
      %p144 = scmp.eq.s32.totalorder %s33, 2
      %p145 = por %p143, %p144
      %p146 = scmp.ne.s32.totalorder %s137, %s138
      %p147 = scmp.eq.s32.totalorder %s33, 0
      %p148 = por %p146, %p147
      %p149 = scmp.ne.s32.totalorder %s137, %s138
      %p150 = scmp.eq.s32.totalorder %s34, 2
      %p151 = por %p149, %p150
      %p153 = scmp.ne.s32.totalorder %s138, %s152
      %p154 = scmp.eq.s32.totalorder %s34, 0
      %p155 = por %p153, %p154
      %s157 = sadd.s32 %s156, 1
      %p160 = scmp.eq.s32.totalorder %s28, 2
      %p161 = scmp.ne.s32.totalorder %s156, %s158
      %p162 = scmp.eq.s32.totalorder %s28, 0
      %p163 = por %p161, %p162
      %p164 = scmp.ne.s32.totalorder %s156, %s158
      %p165 = scmp.eq.s32.totalorder %s33, 2
      %p166 = por %p164, %p165
      %p167 = scmp.ne.s32.totalorder %s158, %s159
      %p168 = scmp.eq.s32.totalorder %s33, 0
      %p169 = por %p167, %p168
      %p170 = scmp.ne.s32.totalorder %s158, %s159
      %p171 = scmp.eq.s32.totalorder %s34, 2
      %p172 = por %p170, %p171
      %p174 = scmp.ne.s32.totalorder %s159, %s173
      %p175 = scmp.eq.s32.totalorder %s34, 0
      %p176 = por %p174, %p175
      %s178 = sadd.s32 %s177, 1
      %p181 = scmp.eq.s32.totalorder %s28, 2
      %p182 = scmp.ne.s32.totalorder %s177, %s179
      %p183 = scmp.eq.s32.totalorder %s28, 0
      %p184 = por %p182, %p183
      %p185 = scmp.ne.s32.totalorder %s177, %s179
      %p186 = scmp.eq.s32.totalorder %s33, 2
      %p187 = por %p185, %p186
      %p188 = scmp.ne.s32.totalorder %s179, %s180
      %p189 = scmp.eq.s32.totalorder %s33, 0
      %p190 = por %p188, %p189
      %p191 = scmp.ne.s32.totalorder %s179, %s180
      %p192 = scmp.eq.s32.totalorder %s34, 2
      %p193 = por %p191, %p192
      %p195 = scmp.ne.s32.totalorder %s180, %s194
      %p196 = scmp.eq.s32.totalorder %s34, 0
      %p197 = por %p195, %p196
      %s199 = sadd.s32 %s198, 1
      %p202 = scmp.eq.s32.totalorder %s28, 2
      %p203 = scmp.ne.s32.totalorder %s198, %s200
      %p204 = scmp.eq.s32.totalorder %s28, 0
      %p205 = por %p203, %p204
      %p206 = scmp.ne.s32.totalorder %s198, %s200
      %p207 = scmp.eq.s32.totalorder %s33, 2
      %p208 = por %p206, %p207
      %p209 = scmp.ne.s32.totalorder %s200, %s201
      %p210 = scmp.eq.s32.totalorder %s33, 0
      %p211 = por %p209, %p210
      %p212 = scmp.ne.s32.totalorder %s200, %s201
      %p213 = scmp.eq.s32.totalorder %s34, 2
      %p214 = por %p212, %p213
      %p216 = scmp.ne.s32.totalorder %s201, %s215
      %p217 = scmp.eq.s32.totalorder %s34, 0
      %p218 = por %p216, %p217
      %s220 = sadd.s32 %s219, 1
      %p223 = scmp.eq.s32.totalorder %s28, 2
      %p224 = scmp.ne.s32.totalorder %s219, %s221
      %p225 = scmp.eq.s32.totalorder %s28, 0
      %p226 = por %p224, %p225
      %p227 = scmp.ne.s32.totalorder %s219, %s221
      %p228 = scmp.eq.s32.totalorder %s33, 2
      %p229 = por %p227, %p228
      %p230 = scmp.ne.s32.totalorder %s221, %s222
      %p231 = scmp.eq.s32.totalorder %s33, 0
      %p232 = por %p230, %p231
      %p233 = scmp.ne.s32.totalorder %s221, %s222
      %p234 = scmp.eq.s32.totalorder %s34, 2
      %p235 = por %p233, %p234
      %p237 = scmp.ne.s32.totalorder %s222, %s236
      %p238 = scmp.eq.s32.totalorder %s34, 0
      %p239 = por %p237, %p238
      %s240 = ssub.s32 %s28, %s35
      %p241 = scmp.eq.s32.totalorder %s240, 0
      %s243 = sadd.s32 %s242, 1
      %s244 = scalar_select %p241, %s242, %s243
      %p247 = pneg %p241
      %p248 = scmp.eq.s32.totalorder %s28, 2
      %p249 = por %p247, %p248
      %p250 = scmp.ne.s32.totalorder %s242, %s245
      %p251 = scmp.eq.s32.totalorder %s28, 0
      %p252 = por %p250, %p251
      %p253 = scmp.ne.s32.totalorder %s242, %s245
      %p254 = scmp.eq.s32.totalorder %s33, 2
      %p255 = por %p253, %p254
      %p256 = scmp.ne.s32.totalorder %s245, %s246
      %p257 = scmp.eq.s32.totalorder %s33, 0
      %p258 = por %p256, %p257
      %p259 = scmp.ne.s32.totalorder %s245, %s246
      %p260 = scmp.eq.s32.totalorder %s34, 2
      %p261 = por %p259, %p260
      %p263 = scmp.ne.s32.totalorder %s246, %s262
      %p264 = scmp.eq.s32.totalorder %s34, 0
      %p265 = por %p263, %p264
      %s266 = ssub.s32 %s28, %s35
      %p267 = scmp.eq.s32.totalorder %s266, 0
      %s269 = sadd.s32 %s268, 1
      %s270 = scalar_select %p267, %s268, %s269
      %p273 = pneg %p267
      %p274 = scmp.eq.s32.totalorder %s28, 2
      %p275 = por %p273, %p274
      %p276 = scmp.ne.s32.totalorder %s268, %s271
      %p277 = scmp.eq.s32.totalorder %s28, 0
      %p278 = por %p276, %p277
      %p279 = scmp.ne.s32.totalorder %s268, %s271
      %p280 = scmp.eq.s32.totalorder %s33, 2
      %p281 = por %p279, %p280
      %p282 = scmp.ne.s32.totalorder %s271, %s272
      %p283 = scmp.eq.s32.totalorder %s33, 0
      %p284 = por %p282, %p283
      %p285 = scmp.ne.s32.totalorder %s271, %s272
      %p286 = scmp.eq.s32.totalorder %s34, 2
      %p287 = por %p285, %p286
      %p289 = scmp.ne.s32.totalorder %s272, %s288
      %p290 = scmp.eq.s32.totalorder %s34, 0
      %p291 = por %p289, %p290
      %p292 = scmp.le.s32.totalorder 1, %s28
      %p293 = scmp.lt.s32.totalorder %s28, 4
      %p294 = pnand %p292, %p293
      %p295 = pneg %p294
      // Predicated region
      $region9: #{tpu_custom_call.1} parent=5 // pred_check
        _
      $region10: #{tpu_custom_call.1} parent=5 // pred_check_branch
        %297 = sbr.rel (%p294) target = $region12
      $region11: #{tpu_custom_call.1} parent=5 // pred_region
        %s298 = ssub.s32 %s28, 1
        // Predicated region
        $region13: #{tpu_custom_call.1} parent=11 // pred_check
          %p299 = pneg %p127
        $region14: #{tpu_custom_call.1} parent=11 // pred_check_branch
          %301 = sbr.rel (%p299) target = $region16
        $region15: #{tpu_custom_call.1} parent=11 // pred_region
          %s303 = ssub.s32 3072, 3072
          %304 = vsyncadd [#allocation9], %s303
          %s305 = sshll.u32 [#allocation8], 4
          %s306 = int_to_ptr.vmem [resolvable:$true] %s305
          %311 = dma.hbm_to_vmem [thread:$0]  %s3, 3072, %s306, [#allocation9], 64, 64, 4
        $region16: #{tpu_custom_call.1} parent=11 // pred_fallthru
          _
        // Predicated region
        $region17: #{tpu_custom_call.1} parent=11 // pred_check
          %p312 = pneg %p148
        $region18: #{tpu_custom_call.1} parent=11 // pred_check_branch
          %314 = sbr.rel (%p312) target = $region20
        $region19: #{tpu_custom_call.1} parent=11 // pred_region
          _
        $region20: #{tpu_custom_call.1} parent=11 // pred_fallthru
          _
        // Predicated region
        $region21: #{tpu_custom_call.1} parent=11 // pred_check
          %p315 = pneg %p169
        $region22: #{tpu_custom_call.1} parent=11 // pred_check_branch
          %317 = sbr.rel (%p315) target = $region24
        $region23: #{tpu_custom_call.1} parent=11 // pred_region
          %s319 = ssub.s32 2048, 2048
          %320 = vsyncadd [#allocation9], %s319
          %s321 = sshll.u32 [#allocation10], 4
          %s322 = int_to_ptr.vmem [resolvable:$true] %s321
          %327 = dma.hbm_to_vmem [thread:$0]  %s5, 2048, %s322, [#allocation9], 64, 64, 4
        $region24: #{tpu_custom_call.1} parent=11 // pred_fallthru
          _
        // Predicated region
        $region25: #{tpu_custom_call.1} parent=11 // pred_check
          %p328 = pneg %p190
        $region26: #{tpu_custom_call.1} parent=11 // pred_check_branch
          %330 = sbr.rel (%p328) target = $region28
        $region27: #{tpu_custom_call.1} parent=11 // pred_region
          _
        $region28: #{tpu_custom_call.1} parent=11 // pred_fallthru
          _
        // Predicated region
        $region29: #{tpu_custom_call.1} parent=11 // pred_check
          %p331 = pneg %p211
        $region30: #{tpu_custom_call.1} parent=11 // pred_check_branch
          %333 = sbr.rel (%p331) target = $region32
        $region31: #{tpu_custom_call.1} parent=11 // pred_region
          %s335 = ssub.s32 2048, 2048
          %336 = vsyncadd [#allocation12], %s335
          %s337 = sshll.u32 [#allocation11], 4
          %s338 = int_to_ptr.vmem [resolvable:$true] %s337
          %343 = dma.hbm_to_vmem [thread:$0]  %s7, 2048, %s338, [#allocation12], 64, 64, 4
        $region32: #{tpu_custom_call.1} parent=11 // pred_fallthru
          _
        // Predicated region
        $region33: #{tpu_custom_call.1} parent=11 // pred_check
          %p344 = pneg %p232
        $region34: #{tpu_custom_call.1} parent=11 // pred_check_branch
          %346 = sbr.rel (%p344) target = $region36
        $region35: #{tpu_custom_call.1} parent=11 // pred_region
          _
        $region36: #{tpu_custom_call.1} parent=11 // pred_fallthru
          _
      $region12: #{tpu_custom_call.1} parent=5 // pred_fallthru
        _
      %p347 = scmp.lt.s32.totalorder %s28, 3
      // Predicated region
      $region37: #{tpu_custom_call.1} parent=5 // pred_check
        %p348 = pneg %p347
      $region38: #{tpu_custom_call.1} parent=5 // pred_check_branch
        %350 = sbr.rel (%p348) target = $region40
      $region39: #{tpu_custom_call.1} parent=5 // pred_region
        // Predicated region
        $region41: #{tpu_custom_call.1} parent=39 // pred_check
          %p351 = pneg %p48
        $region42: #{tpu_custom_call.1} parent=39 // pred_check_branch
          %353 = sbr.rel (%p351) target = $region44
        $region43: #{tpu_custom_call.1} parent=39 // pred_region
          %s354 = sand.u32 %s38, 1
          %s355 = scalar_lea.sflag [#allocation3], %s354
          %s356 = sand.u32 %s38, 1
          %s357 = smul.addr %s356, 64
          %s358 = scalar_lea.vmem [#allocation2], %s357
          %s359 = smul.u32 16, %s28
          %s361 = ssub.s32 1024, 1024
          %362 = vsyncadd %s355, %s361
          %s363 = smul.addr %s359, 64
          %s364 = scalar_lea.hbm %s0, %s363
          %s365 = sshll.u32 %s358, 4
          %s366 = int_to_ptr.vmem [resolvable:$true] %s365
          %371 = dma.hbm_to_vmem [thread:$0]  %s364, 1024, %s366, %s355, 64, 64, 4
        $region44: #{tpu_custom_call.1} parent=39 // pred_fallthru
          _
        // Predicated region
        $region45: #{tpu_custom_call.1} parent=39 // pred_check
          %p372 = pneg %p74
        $region46: #{tpu_custom_call.1} parent=39 // pred_check_branch
          %374 = sbr.rel (%p372) target = $region48
        $region47: #{tpu_custom_call.1} parent=39 // pred_region
          %s375 = sand.u32 %s28, 1
          %s376 = scalar_lea.sflag [#allocation6], %s375
          %s377 = sand.u32 %s64, 1
          %s378 = smul.addr %s377, 64
          %s379 = scalar_lea.vmem [#allocation5], %s378
          %s380 = smul.u32 16, %s28
          %s382 = ssub.s32 1024, 1024
          %383 = vsyncadd %s376, %s382
          %s384 = smul.addr %s380, 64
          %s385 = scalar_lea.hbm %s1, %s384
          %s386 = sshll.u32 %s379, 4
          %s387 = int_to_ptr.vmem [resolvable:$true] %s386
          %392 = dma.hbm_to_vmem [thread:$0]  %s385, 1024, %s387, %s376, 64, 64, 4
        $region48: #{tpu_custom_call.1} parent=39 // pred_fallthru
          _
        // Predicated region
        $region49: #{tpu_custom_call.1} parent=39 // pred_check
          %p393 = pneg %p100
        $region50: #{tpu_custom_call.1} parent=39 // pred_check_branch
          %395 = sbr.rel (%p393) target = $region52
        $region51: #{tpu_custom_call.1} parent=39 // pred_region
          %s396 = sand.u32 %s28, 1
          %s397 = scalar_lea.sflag [#allocation6], %s396
          %s398 = sand.u32 %s90, 1
          %s399 = smul.addr %s398, 64
          %s400 = scalar_lea.vmem [#allocation7], %s399
          %s401 = smul.u32 16, %s28
          %s403 = ssub.s32 1024, 1024
          %404 = vsyncadd %s397, %s403
          %s405 = smul.addr %s401, 64
          %s406 = scalar_lea.hbm %s2, %s405
          %s407 = sshll.u32 %s400, 4
          %s408 = int_to_ptr.vmem [resolvable:$true] %s407
          %413 = dma.hbm_to_vmem [thread:$0]  %s406, 1024, %s408, %s397, 64, 64, 4
        $region52: #{tpu_custom_call.1} parent=39 // pred_fallthru
          _
      $region40: #{tpu_custom_call.1} parent=5 // pred_fallthru
        _
      %p414 = scmp.le.s32.totalorder 1, %s28
      %p415 = scmp.lt.s32.totalorder %s28, 4
      %p416 = pnand %p414, %p415
      %p417 = pneg %p416
      // Predicated region
      $region53: #{tpu_custom_call.1} parent=5 // pred_check
        _
      $region54: #{tpu_custom_call.1} parent=5 // pred_check_branch
        %419 = sbr.rel (%p416) target = $region56
      $region55: #{tpu_custom_call.1} parent=5 // pred_region
        %s420 = ssub.s32 %s28, 1
        %s421 = sand.u32 %s41, 1
        %s422 = scalar_lea.sflag [#allocation3], %s421
        %s423 = sand.u32 %s41, 1
        %s424 = smul.addr %s423, 64
        %s425 = scalar_lea.vmem [#allocation2], %s424
        // Predicated region
        $region57: #{tpu_custom_call.1} parent=55 // pred_check
          %p426 = pneg %p54
        $region58: #{tpu_custom_call.1} parent=55 // pred_check_branch
          %428 = sbr.rel (%p426) target = $region60
        $region59: #{tpu_custom_call.1} parent=55 // pred_region
          %429 = dma.done %s422, 1024
        $region60: #{tpu_custom_call.1} parent=55 // pred_fallthru
          _
        %s430 = sand.u32 %s33, 1
        %s431 = scalar_lea.sflag [#allocation6], %s430
        %s432 = sand.u32 %s67, 1
        %s433 = smul.addr %s432, 64
        %s434 = scalar_lea.vmem [#allocation5], %s433
        // Predicated region
        $region61: #{tpu_custom_call.1} parent=55 // pred_check
          %p435 = pneg %p80
        $region62: #{tpu_custom_call.1} parent=55 // pred_check_branch
          %437 = sbr.rel (%p435) target = $region64
        $region63: #{tpu_custom_call.1} parent=55 // pred_region
          %438 = dma.done %s431, 1024
        $region64: #{tpu_custom_call.1} parent=55 // pred_fallthru
          _
        %s439 = sand.u32 %s33, 1
        %s440 = scalar_lea.sflag [#allocation6], %s439
        %s441 = sand.u32 %s93, 1
        %s442 = smul.addr %s441, 64
        %s443 = scalar_lea.vmem [#allocation7], %s442
        // Predicated region
        $region65: #{tpu_custom_call.1} parent=55 // pred_check
          %p444 = pneg %p106
        $region66: #{tpu_custom_call.1} parent=55 // pred_check_branch
          %446 = sbr.rel (%p444) target = $region68
        $region67: #{tpu_custom_call.1} parent=55 // pred_region
          %447 = dma.done %s440, 1024
        $region68: #{tpu_custom_call.1} parent=55 // pred_fallthru
          _
        // Predicated region
        $region69: #{tpu_custom_call.1} parent=55 // pred_check
          %p448 = pneg %p127
        $region70: #{tpu_custom_call.1} parent=55 // pred_check_branch
          %450 = sbr.rel (%p448) target = $region72
        $region71: #{tpu_custom_call.1} parent=55 // pred_region
          %451 = dma.done [#allocation9], 3072
        $region72: #{tpu_custom_call.1} parent=55 // pred_fallthru
          _
        // Predicated region
        $region73: #{tpu_custom_call.1} parent=55 // pred_check
          %p452 = pneg %p169
        $region74: #{tpu_custom_call.1} parent=55 // pred_check_branch
          %454 = sbr.rel (%p452) target = $region76
        $region75: #{tpu_custom_call.1} parent=55 // pred_region
          %455 = dma.done [#allocation9], 2048
        $region76: #{tpu_custom_call.1} parent=55 // pred_fallthru
          _
        // Predicated region
        $region77: #{tpu_custom_call.1} parent=55 // pred_check
          %p456 = pneg %p211
        $region78: #{tpu_custom_call.1} parent=55 // pred_check_branch
          %458 = sbr.rel (%p456) target = $region80
        $region79: #{tpu_custom_call.1} parent=55 // pred_region
          %459 = dma.done [#allocation12], 2048
        $region80: #{tpu_custom_call.1} parent=55 // pred_fallthru
          _
        %s460 = sand.u32 %s41, 1
        %s461 = scalar_lea.sflag [#allocation3], %s460
        %s462 = sand.u32 %s41, 1
        %s463 = smul.addr %s462, 64
        %s464 = scalar_lea.vmem [#allocation2], %s463
        %p465 = pneg %p54
        %p466 = pneg %p51
        %s467 = sand.u32 %s33, 1
        %s468 = scalar_lea.sflag [#allocation6], %s467
        %s469 = sand.u32 %s67, 1
        %s470 = smul.addr %s469, 64
        %s471 = scalar_lea.vmem [#allocation5], %s470
        %p472 = pneg %p80
        %p473 = pneg %p77
        %s474 = sand.u32 %s33, 1
        %s475 = scalar_lea.sflag [#allocation6], %s474
        %s476 = sand.u32 %s93, 1
        %s477 = smul.addr %s476, 64
        %s478 = scalar_lea.vmem [#allocation7], %s477
        %p479 = pneg %p106
        %p480 = pneg %p103
        %p481 = pneg %p127
        %p482 = pneg %p124
        %p483 = pneg %p148
        %p484 = pneg %p145
        %p485 = pneg %p169
        %p486 = pneg %p166
        %p487 = pneg %p190
        %p488 = pneg %p187
        %p489 = pneg %p211
        %p490 = pneg %p208
        %p491 = pneg %p232
        %p492 = pneg %p229
        %p493 = pneg %p258
        %p494 = pneg %p255
        %s495 = sand.u32 %s245, 1
        %s496 = scalar_lea.sflag [#allocation4], %s495
        %s497 = sand.u32 %s245, 1
        %s498 = smul.addr %s497, 128
        %s499 = scalar_lea.vmem [#allocation13], %s498
        %p500 = pneg %p284
        %p501 = pneg %p281
        %s502 = smul.u32 16, %s33
        %p503 = scmp.lt.s32.totalorder %s502, 47
        %s504 = scalar_select %p503, %s502, 47
        %s505 = smul.addr %s504, 8
        %s506 = scalar_lea.vmem %s10, %s505
        %s507 = smul.u32 16, %s33
        %s508 = smul.u32 16, %s33
        %s509 = smul.u32 16, %s33
        %s510 = smul.u32 16, %s33
        %s511 = smul.u32 16, %s33
        %p512 = scmp.lt.s32.totalorder %s511, 47
        %s513 = scalar_select %p512, %s511, 47
        %s514 = smul.addr %s513, 8
        %s515 = scalar_lea.vmem %s10, %s514
        %s516 = smul.u32 16, %s33
        %v518 = vld [vmem:[%s425] sm:$0xf]
        %v519 = vld [vmem:[%s425 + $0x4] sm:$0xf]
        %v520 = vld [vmem:[%s425 + $0x8] sm:$0xf]
        %v521 = vld [vmem:[%s425 + $0xc] sm:$0xf]
        %v522 = vld [vmem:[%s425 + $0x10] sm:$0xf]
        %v523 = vld [vmem:[%s425 + $0x14] sm:$0xf]
        %v524 = vld [vmem:[%s425 + $0x18] sm:$0xf]
        %v525 = vld [vmem:[%s425 + $0x1c] sm:$0xf]
        %v526 = vld [vmem:[%s425 + $0x20] sm:$0xf]
        %v527 = vld [vmem:[%s425 + $0x24] sm:$0xf]
        %v528 = vld [vmem:[%s425 + $0x28] sm:$0xf]
        %v529 = vld [vmem:[%s425 + $0x2c] sm:$0xf]
        %v530 = vld [vmem:[%s425 + $0x30] sm:$0xf]
        %v531 = vld [vmem:[%s425 + $0x34] sm:$0xf]
        %v532 = vld [vmem:[%s425 + $0x38] sm:$0xf]
        %v533 = vld [vmem:[%s425 + $0x3c] sm:$0xf]
        %v534 = vld [vmem:[%s434] sm:$0xf]
        %v535 = vld [vmem:[%s434 + $0x4] sm:$0xf]
        %v536 = vld [vmem:[%s434 + $0x8] sm:$0xf]
        %v537 = vld [vmem:[%s434 + $0xc] sm:$0xf]
        %v538 = vld [vmem:[%s434 + $0x10] sm:$0xf]
        %v539 = vld [vmem:[%s434 + $0x14] sm:$0xf]
        %v540 = vld [vmem:[%s434 + $0x18] sm:$0xf]
        %v541 = vld [vmem:[%s434 + $0x1c] sm:$0xf]
        %v542 = vld [vmem:[%s434 + $0x20] sm:$0xf]
        %v543 = vld [vmem:[%s434 + $0x24] sm:$0xf]
        %v544 = vld [vmem:[%s434 + $0x28] sm:$0xf]
        %v545 = vld [vmem:[%s434 + $0x2c] sm:$0xf]
        %v546 = vld [vmem:[%s434 + $0x30] sm:$0xf]
        %v547 = vld [vmem:[%s434 + $0x34] sm:$0xf]
        %v548 = vld [vmem:[%s434 + $0x38] sm:$0xf]
        %v549 = vld [vmem:[%s434 + $0x3c] sm:$0xf]
        %v550 = vld [vmem:[%s443] sm:$0xf]
        %v551 = vld [vmem:[%s443 + $0x4] sm:$0xf]
        %v552 = vld [vmem:[%s443 + $0x8] sm:$0xf]
        %v553 = vld [vmem:[%s443 + $0xc] sm:$0xf]
        %v554 = vld [vmem:[%s443 + $0x10] sm:$0xf]
        %v555 = vld [vmem:[%s443 + $0x14] sm:$0xf]
        %v556 = vld [vmem:[%s443 + $0x18] sm:$0xf]
        %v557 = vld [vmem:[%s443 + $0x1c] sm:$0xf]
        %v558 = vld [vmem:[%s443 + $0x20] sm:$0xf]
        %v559 = vld [vmem:[%s443 + $0x24] sm:$0xf]
        %v560 = vld [vmem:[%s443 + $0x28] sm:$0xf]
        %v561 = vld [vmem:[%s443 + $0x2c] sm:$0xf]
        %v562 = vld [vmem:[%s443 + $0x30] sm:$0xf]
        %v563 = vld [vmem:[%s443 + $0x34] sm:$0xf]
        %v564 = vld [vmem:[%s443 + $0x38] sm:$0xf]
        %v565 = vld [vmem:[%s443 + $0x3c] sm:$0xf]
        %v582 = vunpack.c.l.b16 %v518
        %v583 = vunpack.c.l.b16 %v519
        %v584 = vunpack.c.l.b16 %v520
        %v585 = vunpack.c.l.b16 %v521
        %v586 = vunpack.c.l.b16 %v522
        %v587 = vunpack.c.l.b16 %v523
        %v588 = vunpack.c.l.b16 %v524
        %v589 = vunpack.c.l.b16 %v525
        %v590 = vunpack.c.l.b16 %v526
        %v591 = vunpack.c.l.b16 %v527
        %v592 = vunpack.c.l.b16 %v528
        %v593 = vunpack.c.l.b16 %v529
        %v594 = vunpack.c.l.b16 %v530
        %v595 = vunpack.c.l.b16 %v531
        %v596 = vunpack.c.l.b16 %v532
        %v597 = vunpack.c.l.b16 %v533
        %v598 = vpack.c.b16 %v583, %v582
        %v599 = vpack.c.b16 %v585, %v584
        %v600 = vpack.c.b16 %v587, %v586
        %v601 = vpack.c.b16 %v589, %v588
        %v602 = vpack.c.b16 %v591, %v590
        %v603 = vpack.c.b16 %v593, %v592
        %v604 = vpack.c.b16 %v595, %v594
        %v605 = vpack.c.b16 %v597, %v596
        %v630 = vunpack.c.l.b16 %v534
        %v631 = vunpack.c.l.b16 %v535
        %v632 = vunpack.c.l.b16 %v536
        %v633 = vunpack.c.l.b16 %v537
        %v634 = vunpack.c.l.b16 %v538
        %v635 = vunpack.c.l.b16 %v539
        %v636 = vunpack.c.l.b16 %v540
        %v637 = vunpack.c.l.b16 %v541
        %v638 = vunpack.c.l.b16 %v542
        %v639 = vunpack.c.l.b16 %v543
        %v640 = vunpack.c.l.b16 %v544
        %v641 = vunpack.c.l.b16 %v545
        %v642 = vunpack.c.l.b16 %v546
        %v643 = vunpack.c.l.b16 %v547
        %v644 = vunpack.c.l.b16 %v548
        %v645 = vunpack.c.l.b16 %v549
        %v646 = vpack.c.b16 %v631, %v630
        %v647 = vpack.c.b16 %v633, %v632
        %v648 = vpack.c.b16 %v635, %v634
        %v649 = vpack.c.b16 %v637, %v636
        %v650 = vpack.c.b16 %v639, %v638
        %v651 = vpack.c.b16 %v641, %v640
        %v652 = vpack.c.b16 %v643, %v642
        %v653 = vpack.c.b16 %v645, %v644
        %v678 = vunpack.c.l.b16 %v550
        %v679 = vunpack.c.l.b16 %v551
        %v680 = vunpack.c.l.b16 %v552
        %v681 = vunpack.c.l.b16 %v553
        %v682 = vunpack.c.l.b16 %v554
        %v683 = vunpack.c.l.b16 %v555
        %v684 = vunpack.c.l.b16 %v556
        %v685 = vunpack.c.l.b16 %v557
        %v686 = vunpack.c.l.b16 %v558
        %v687 = vunpack.c.l.b16 %v559
        %v688 = vunpack.c.l.b16 %v560
        %v689 = vunpack.c.l.b16 %v561
        %v690 = vunpack.c.l.b16 %v562
        %v691 = vunpack.c.l.b16 %v563
        %v692 = vunpack.c.l.b16 %v564
        %v693 = vunpack.c.l.b16 %v565
        %v694 = vpack.c.b16 %v679, %v678
        %v695 = vpack.c.b16 %v681, %v680
        %v696 = vpack.c.b16 %v683, %v682
        %v697 = vpack.c.b16 %v685, %v684
        %v698 = vpack.c.b16 %v687, %v686
        %v699 = vpack.c.b16 %v689, %v688
        %v700 = vpack.c.b16 %v691, %v690
        %v701 = vpack.c.b16 %v693, %v692
        %v710 = vld [vmem:[#allocation8] sm:$0xf]
        %v711 = vld [vmem:[#allocation8 + $0x4] sm:$0xf]
        %v712 = vld [vmem:[#allocation8 + $0x8] sm:$0xf]
        %v713 = vld [vmem:[#allocation8 + $0xc] sm:$0xf]
        %v714 = vld [vmem:[#allocation8 + $0x10] sm:$0xf]
        %v715 = vld [vmem:[#allocation8 + $0x14] sm:$0xf]
        %v716 = vld [vmem:[#allocation8 + $0x18] sm:$0xf]
        %v717 = vld [vmem:[#allocation8 + $0x1c] sm:$0xf]
        %v718 = vld [vmem:[#allocation8 + $0x20] sm:$0xf]
        %v719 = vld [vmem:[#allocation8 + $0x24] sm:$0xf]
        %v720 = vld [vmem:[#allocation8 + $0x28] sm:$0xf]
        %v721 = vld [vmem:[#allocation8 + $0x2c] sm:$0xf]
        %v722 = vld [vmem:[#allocation8 + $0x30] sm:$0xf]
        %v723 = vld [vmem:[#allocation8 + $0x34] sm:$0xf]
        %v724 = vld [vmem:[#allocation8 + $0x38] sm:$0xf]
        %v725 = vld [vmem:[#allocation8 + $0x3c] sm:$0xf]
        %v726 = vld [vmem:[#allocation8 + $0x40] sm:$0xf]
        %v727 = vld [vmem:[#allocation8 + $0x44] sm:$0xf]
        %v728 = vld [vmem:[#allocation8 + $0x48] sm:$0xf]
        %v729 = vld [vmem:[#allocation8 + $0x4c] sm:$0xf]
        %v730 = vld [vmem:[#allocation8 + $0x50] sm:$0xf]
        %v731 = vld [vmem:[#allocation8 + $0x54] sm:$0xf]
        %v732 = vld [vmem:[#allocation8 + $0x58] sm:$0xf]
        %v733 = vld [vmem:[#allocation8 + $0x5c] sm:$0xf]
        %v734 = vld [vmem:[#allocation8 + $0x60] sm:$0xf]
        %v735 = vld [vmem:[#allocation8 + $0x64] sm:$0xf]
        %v736 = vld [vmem:[#allocation8 + $0x68] sm:$0xf]
        %v737 = vld [vmem:[#allocation8 + $0x6c] sm:$0xf]
        %v738 = vld [vmem:[#allocation8 + $0x70] sm:$0xf]
        %v739 = vld [vmem:[#allocation8 + $0x74] sm:$0xf]
        %v740 = vld [vmem:[#allocation8 + $0x78] sm:$0xf]
        %v741 = vld [vmem:[#allocation8 + $0x7c] sm:$0xf]
        %v742 = vld [vmem:[#allocation8 + $0x80] sm:$0xf]
        %v743 = vld [vmem:[#allocation8 + $0x84] sm:$0xf]
        %v744 = vld [vmem:[#allocation8 + $0x88] sm:$0xf]
        %v745 = vld [vmem:[#allocation8 + $0x8c] sm:$0xf]
        %v746 = vld [vmem:[#allocation8 + $0x90] sm:$0xf]
        %v747 = vld [vmem:[#allocation8 + $0x94] sm:$0xf]
        %v748 = vld [vmem:[#allocation8 + $0x98] sm:$0xf]
        %v749 = vld [vmem:[#allocation8 + $0x9c] sm:$0xf]
        %v750 = vld [vmem:[#allocation8 + $0xa0] sm:$0xf]
        %v751 = vld [vmem:[#allocation8 + $0xa4] sm:$0xf]
        %v752 = vld [vmem:[#allocation8 + $0xa8] sm:$0xf]
        %v753 = vld [vmem:[#allocation8 + $0xac] sm:$0xf]
        %v754 = vld [vmem:[#allocation8 + $0xb0] sm:$0xf]
        %v755 = vld [vmem:[#allocation8 + $0xb4] sm:$0xf]
        %v756 = vld [vmem:[#allocation8 + $0xb8] sm:$0xf]
        %v757 = vld [vmem:[#allocation8 + $0xbc] sm:$0xf]
        %v758 = vld [vmem:[%s4] sm:$0x1]
        %v760 = vlaneseq
        %v761 = vshrl.u32 %v760, 7
        %v762 = vsub.s32 0, %v761
        %v763 = vrot.slane %v758, %v762
        %v813 = vunpack.c.l.b16 %v710
        %v814 = vunpack.c.l.b16 %v711
        %v815 = vunpack.c.l.b16 %v712
        %v816 = vunpack.c.l.b16 %v713
        %v817 = vunpack.c.l.b16 %v714
        %v818 = vunpack.c.l.b16 %v715
        %v819 = vunpack.c.l.b16 %v716
        %v820 = vunpack.c.l.b16 %v717
        %v821 = vunpack.c.l.b16 %v718
        %v822 = vunpack.c.l.b16 %v719
        %v823 = vunpack.c.l.b16 %v720
        %v824 = vunpack.c.l.b16 %v721
        %v825 = vunpack.c.l.b16 %v722
        %v826 = vunpack.c.l.b16 %v723
        %v827 = vunpack.c.l.b16 %v724
        %v828 = vunpack.c.l.b16 %v725
        %v829 = vunpack.c.l.b16 %v726
        %v830 = vunpack.c.l.b16 %v727
        %v831 = vunpack.c.l.b16 %v728
        %v832 = vunpack.c.l.b16 %v729
        %v833 = vunpack.c.l.b16 %v730
        %v834 = vunpack.c.l.b16 %v731
        %v835 = vunpack.c.l.b16 %v732
        %v836 = vunpack.c.l.b16 %v733
        %v837 = vunpack.c.l.b16 %v734
        %v838 = vunpack.c.l.b16 %v735
        %v839 = vunpack.c.l.b16 %v736
        %v840 = vunpack.c.l.b16 %v737
        %v841 = vunpack.c.l.b16 %v738
        %v842 = vunpack.c.l.b16 %v739
        %v843 = vunpack.c.l.b16 %v740
        %v844 = vunpack.c.l.b16 %v741
        %v845 = vunpack.c.l.b16 %v742
        %v846 = vunpack.c.l.b16 %v743
        %v847 = vunpack.c.l.b16 %v744
        %v848 = vunpack.c.l.b16 %v745
        %v849 = vunpack.c.l.b16 %v746
        %v850 = vunpack.c.l.b16 %v747
        %v851 = vunpack.c.l.b16 %v748
        %v852 = vunpack.c.l.b16 %v749
        %v853 = vunpack.c.l.b16 %v750
        %v854 = vunpack.c.l.b16 %v751
        %v855 = vunpack.c.l.b16 %v752
        %v856 = vunpack.c.l.b16 %v753
        %v857 = vunpack.c.l.b16 %v754
        %v858 = vunpack.c.l.b16 %v755
        %v859 = vunpack.c.l.b16 %v756
        %v860 = vunpack.c.l.b16 %v757
        %v861 = vpack.c.b16 %v814, %v813
        %v862 = vpack.c.b16 %v816, %v815
        %v863 = vpack.c.b16 %v818, %v817
        %v864 = vpack.c.b16 %v820, %v819
        %v865 = vpack.c.b16 %v822, %v821
        %v866 = vpack.c.b16 %v824, %v823
        %v867 = vpack.c.b16 %v826, %v825
        %v868 = vpack.c.b16 %v828, %v827
        %v869 = vpack.c.b16 %v830, %v829
        %v870 = vpack.c.b16 %v832, %v831
        %v871 = vpack.c.b16 %v834, %v833
        %v872 = vpack.c.b16 %v836, %v835
        %v873 = vpack.c.b16 %v838, %v837
        %v874 = vpack.c.b16 %v840, %v839
        %v875 = vpack.c.b16 %v842, %v841
        %v876 = vpack.c.b16 %v844, %v843
        %v877 = vpack.c.b16 %v846, %v845
        %v878 = vpack.c.b16 %v848, %v847
        %v879 = vpack.c.b16 %v850, %v849
        %v880 = vpack.c.b16 %v852, %v851
        %v881 = vpack.c.b16 %v854, %v853
        %v882 = vpack.c.b16 %v856, %v855
        %v883 = vpack.c.b16 %v858, %v857
        %v884 = vpack.c.b16 %v860, %v859
        %909 = vmatprep.subr.bf16.mxu0 0
        %910 = vmatpush1.bf16.msra.mxu0 %v861
        %911 = vmatprep.subr.bf16.mxu0 0
        %912 = vmatpush1.bf16.msra.mxu0 %v862
        %913 = vmatprep.subr.bf16.mxu0 0
        %914 = vmatpush1.bf16.msra.mxu0 %v863
        %915 = vmatprep.subr.bf16.mxu0 0
        %916 = vmatpush1.bf16.msra.mxu0 %v864
        %917 = vmatprep.subr.bf16.mxu0 0
        %918 = vmatpush1.bf16.msra.mxu0 %v865
        %919 = vmatprep.subr.bf16.mxu0 0
        %920 = vmatpush1.bf16.msra.mxu0 %v866
        %921 = vmatprep.subr.bf16.mxu0 0
        %922 = vmatpush1.bf16.msra.mxu0 %v867
        %923 = vmatprep.subr.bf16.mxu0 0
        %924 = vmatpush1.bf16.msra.mxu0 %v868
        %925 = vmatprep.subr.bf16.mxu0 0
        %926 = vmatpush1.bf16.msra.mxu0 %v869
        %927 = vmatprep.subr.bf16.mxu0 0
        %928 = vmatpush1.bf16.msra.mxu0 %v870
        %929 = vmatprep.subr.bf16.mxu0 0
        %930 = vmatpush1.bf16.msra.mxu0 %v871
        %931 = vmatprep.subr.bf16.mxu0 0
        %932 = vmatpush1.bf16.msra.mxu0 %v872
        %933 = vmatprep.subr.bf16.mxu0 0
        %934 = vmatpush1.bf16.msra.mxu0 %v873
        %935 = vmatprep.subr.bf16.mxu0 0
        %936 = vmatpush1.bf16.msra.mxu0 %v874
        %937 = vmatprep.subr.bf16.mxu0 0
        %938 = vmatpush1.bf16.msra.mxu0 %v875
        %939 = vmatprep.subr.bf16.mxu0 0
        %940 = vmatpush1.bf16.msra.mxu0 %v876
        %941 = vmatprep.mubr.bf16.mxu0 %v646
        %942 = vmatmul.mubr.bf16.gmra.mrb[0].mxu0 %v598
        %v943 = vpop.f32.mrb[0].mxu0
        %v944 = vadd.f32 %v763, %v943
        %v945 = vpop.f32.mrb[0].mxu0
        %v946 = vpop.f32.mrb[0].mxu0
        %v947 = vadd.f32 %v763, %v946
        %v948 = vpop.f32.mrb[0].mxu0
        %949 = vmatprep.mubr.bf16.mxu0 %v647
        %950 = vmatmul.mubr.bf16.gmra.mrb[0].mxu0 %v599
        %v951 = vpop.f32.mrb[0].mxu0
        %v952 = vadd.f32 %v763, %v951
        %v953 = vpop.f32.mrb[0].mxu0
        %v954 = vpop.f32.mrb[0].mxu0
        %v955 = vadd.f32 %v763, %v954
        %v956 = vpop.f32.mrb[0].mxu0
        %957 = vmatprep.mubr.bf16.mxu0 %v648
        %958 = vmatmul.mubr.bf16.gmra.mrb[0].mxu0 %v600
        %v959 = vpop.f32.mrb[0].mxu0
        %v960 = vadd.f32 %v763, %v959
        %v961 = vpop.f32.mrb[0].mxu0
        %v962 = vpop.f32.mrb[0].mxu0
        %v963 = vadd.f32 %v763, %v962
        %v964 = vpop.f32.mrb[0].mxu0
        %965 = vmatprep.mubr.bf16.mxu0 %v649
        %966 = vmatmul.mubr.bf16.gmra.mrb[0].mxu0 %v601
        %v967 = vpop.f32.mrb[0].mxu0
        %v968 = vadd.f32 %v763, %v967
        %v969 = vpop.f32.mrb[0].mxu0
        %v970 = vpop.f32.mrb[0].mxu0
        %v971 = vadd.f32 %v763, %v970
        %v972 = vpop.f32.mrb[0].mxu0
        %973 = vmatprep.mubr.bf16.mxu0 %v650
        %974 = vmatmul.mubr.bf16.gmra.mrb[0].mxu0 %v602
        %v975 = vpop.f32.mrb[0].mxu0
        %v976 = vadd.f32 %v763, %v975
        %v977 = vpop.f32.mrb[0].mxu0
        %v978 = vpop.f32.mrb[0].mxu0
        %v979 = vadd.f32 %v763, %v978
        %v980 = vpop.f32.mrb[0].mxu0
        %981 = vmatprep.mubr.bf16.mxu0 %v651
        %982 = vmatmul.mubr.bf16.gmra.mrb[0].mxu0 %v603
        %v983 = vpop.f32.mrb[0].mxu0
        %v984 = vadd.f32 %v763, %v983
        %v985 = vpop.f32.mrb[0].mxu0
        %v986 = vpop.f32.mrb[0].mxu0
        %v987 = vadd.f32 %v763, %v986
        %v988 = vpop.f32.mrb[0].mxu0
        %989 = vmatprep.mubr.bf16.mxu0 %v652
        %990 = vmatmul.mubr.bf16.gmra.mrb[0].mxu0 %v604
        %v991 = vpop.f32.mrb[0].mxu0
        %v992 = vadd.f32 %v763, %v991
        %v993 = vpop.f32.mrb[0].mxu0
        %v994 = vpop.f32.mrb[0].mxu0
        %v995 = vadd.f32 %v763, %v994
        %v996 = vpop.f32.mrb[0].mxu0
        %997 = vmatprep.mubr.bf16.mxu0 %v653
        %998 = vmatmul.mubr.bf16.gmra.mrb[0].mxu0 %v605
        %v999 = vpop.f32.mrb[0].mxu0
        %v1000 = vadd.f32 %v763, %v999
        %v1001 = vpop.f32.mrb[0].mxu0
        %v1002 = vpop.f32.mrb[0].mxu0
        %v1003 = vadd.f32 %v763, %v1002
        %v1004 = vpop.f32.mrb[0].mxu0
        %1005 = vdwg.mxu0
        %1006 = vmatprep.subr.bf16.mxu0 0
        %1007 = vmatpush1.bf16.msra.mxu0 %v877
        %1008 = vmatprep.subr.bf16.mxu0 0
        %1009 = vmatpush1.bf16.msra.mxu0 %v878
        %1010 = vmatprep.subr.bf16.mxu0 0
        %1011 = vmatpush1.bf16.msra.mxu0 %v879
        %1012 = vmatprep.subr.bf16.mxu0 0
        %1013 = vmatpush1.bf16.msra.mxu0 %v880
        %1014 = vmatprep.subr.bf16.mxu0 0
        %1015 = vmatpush1.bf16.msra.mxu0 %v881
        %1016 = vmatprep.subr.bf16.mxu0 0
        %1017 = vmatpush1.bf16.msra.mxu0 %v882
        %1018 = vmatprep.subr.bf16.mxu0 0
        %1019 = vmatpush1.bf16.msra.mxu0 %v883
        %1020 = vmatprep.subr.bf16.mxu0 0
        %1021 = vmatpush1.bf16.msra.mxu0 %v884
        %1022 = vmatprep.subr.bf16.mxu0 0
        %1023 = vmatpush1.bf16.msra.mxu0 0
        %1024 = vmatprep.subr.bf16.mxu0 0
        %1025 = vmatpush1.bf16.msra.mxu0 0
        %1026 = vmatprep.subr.bf16.mxu0 0
        %1027 = vmatpush1.bf16.msra.mxu0 0
        %1028 = vmatprep.subr.bf16.mxu0 0
        %1029 = vmatpush1.bf16.msra.mxu0 0
        %1030 = vmatprep.subr.bf16.mxu0 0
        %1031 = vmatpush1.bf16.msra.mxu0 0
        %1032 = vmatprep.subr.bf16.mxu0 0
        %1033 = vmatpush1.bf16.msra.mxu0 0
        %1034 = vmatprep.subr.bf16.mxu0 0
        %1035 = vmatpush1.bf16.msra.mxu0 0
        %1036 = vmatprep.subr.bf16.mxu0 0
        %1037 = vmatpush1.bf16.msra.mxu0 0
        %1038 = vmatprep.mubr.bf16.mxu0 0
        %1039 = vmatmul.mubr.bf16.gmra.mrb[0].mxu0 %v694
        %v1040 = vpop.f32.mrb[0].mxu0
        %v1041 = vadd.f32 %v944, %v1040
        %v1042 = vpop.f32.mrb[0].mxu0
        %v1043 = vpop.f32.mrb[0].mxu0
        %v1044 = vadd.f32 %v947, %v1043
        %v1045 = vpop.f32.mrb[0].mxu0
        %1046 = vmatprep.mubr.bf16.mxu0 0
        %1047 = vmatmul.mubr.bf16.gmra.mrb[0].mxu0 %v695
        %v1048 = vpop.f32.mrb[0].mxu0
        %v1049 = vadd.f32 %v952, %v1048
        %v1050 = vpop.f32.mrb[0].mxu0
        %v1051 = vpop.f32.mrb[0].mxu0
        %v1052 = vadd.f32 %v955, %v1051
        %v1053 = vpop.f32.mrb[0].mxu0
        %1054 = vmatprep.mubr.bf16.mxu0 0
        %1055 = vmatmul.mubr.bf16.gmra.mrb[0].mxu0 %v696
        %v1056 = vpop.f32.mrb[0].mxu0
        %v1057 = vadd.f32 %v960, %v1056
        %v1058 = vpop.f32.mrb[0].mxu0
        %v1059 = vpop.f32.mrb[0].mxu0
        %v1060 = vadd.f32 %v963, %v1059
        %v1061 = vpop.f32.mrb[0].mxu0
        %1062 = vmatprep.mubr.bf16.mxu0 0
        %1063 = vmatmul.mubr.bf16.gmra.mrb[0].mxu0 %v697
        %v1064 = vpop.f32.mrb[0].mxu0
        %v1065 = vadd.f32 %v968, %v1064
        %v1066 = vpop.f32.mrb[0].mxu0
        %v1067 = vpop.f32.mrb[0].mxu0
        %v1068 = vadd.f32 %v971, %v1067
        %v1069 = vpop.f32.mrb[0].mxu0
        %1070 = vmatprep.mubr.bf16.mxu0 0
        %1071 = vmatmul.mubr.bf16.gmra.mrb[0].mxu0 %v698
        %v1072 = vpop.f32.mrb[0].mxu0
        %v1073 = vadd.f32 %v976, %v1072
        %v1074 = vpop.f32.mrb[0].mxu0
        %v1075 = vpop.f32.mrb[0].mxu0
        %v1076 = vadd.f32 %v979, %v1075
        %v1077 = vpop.f32.mrb[0].mxu0
        %1078 = vmatprep.mubr.bf16.mxu0 0
        %1079 = vmatmul.mubr.bf16.gmra.mrb[0].mxu0 %v699
        %v1080 = vpop.f32.mrb[0].mxu0
        %v1081 = vadd.f32 %v984, %v1080
        %v1082 = vpop.f32.mrb[0].mxu0
        %v1083 = vpop.f32.mrb[0].mxu0
        %v1084 = vadd.f32 %v987, %v1083
        %v1085 = vpop.f32.mrb[0].mxu0
        %1086 = vmatprep.mubr.bf16.mxu0 0
        %1087 = vmatmul.mubr.bf16.gmra.mrb[0].mxu0 %v700
        %v1088 = vpop.f32.mrb[0].mxu0
        %v1089 = vadd.f32 %v992, %v1088
        %v1090 = vpop.f32.mrb[0].mxu0
        %v1091 = vpop.f32.mrb[0].mxu0
        %v1092 = vadd.f32 %v995, %v1091
        %v1093 = vpop.f32.mrb[0].mxu0
        %1094 = vmatprep.mubr.bf16.mxu0 0
        %1095 = vmatmul.mubr.bf16.gmra.mrb[0].mxu0 %v701
        %v1096 = vpop.f32.mrb[0].mxu0
        %v1097 = vadd.f32 %v1000, %v1096
        %v1098 = vpop.f32.mrb[0].mxu0
        %v1099 = vpop.f32.mrb[0].mxu0
        %v1100 = vadd.f32 %v1003, %v1099
        %v1101 = vpop.f32.mrb[0].mxu0
        %1102 = vdwg.mxu0
        %v1103 = vpack.c.bf16 %v1044, %v1041
        %v1104 = vpack.c.bf16 %v1052, %v1049
        %v1105 = vpack.c.bf16 %v1060, %v1057
        %v1106 = vpack.c.bf16 %v1068, %v1065
        %v1107 = vpack.c.bf16 %v1076, %v1073
        %v1108 = vpack.c.bf16 %v1084, %v1081
        %v1109 = vpack.c.bf16 %v1092, %v1089
        %v1110 = vpack.c.bf16 %v1100, %v1097
        %v1111 = vld [vmem:[#allocation10] sm:$0xf]
        %v1112 = vld [vmem:[#allocation10 + $0x4] sm:$0xf]
        %v1113 = vld [vmem:[#allocation10 + $0x8] sm:$0xf]
        %v1114 = vld [vmem:[#allocation10 + $0xc] sm:$0xf]
        %v1115 = vld [vmem:[#allocation10 + $0x10] sm:$0xf]
        %v1116 = vld [vmem:[#allocation10 + $0x14] sm:$0xf]
        %v1117 = vld [vmem:[#allocation10 + $0x18] sm:$0xf]
        %v1118 = vld [vmem:[#allocation10 + $0x1c] sm:$0xf]
        %v1119 = vld [vmem:[#allocation10 + $0x20] sm:$0xf]
        %v1120 = vld [vmem:[#allocation10 + $0x24] sm:$0xf]
        %v1121 = vld [vmem:[#allocation10 + $0x28] sm:$0xf]
        %v1122 = vld [vmem:[#allocation10 + $0x2c] sm:$0xf]
        %v1123 = vld [vmem:[#allocation10 + $0x30] sm:$0xf]
        %v1124 = vld [vmem:[#allocation10 + $0x34] sm:$0xf]
        %v1125 = vld [vmem:[#allocation10 + $0x38] sm:$0xf]
        %v1126 = vld [vmem:[#allocation10 + $0x3c] sm:$0xf]
        %v1127 = vld [vmem:[#allocation10 + $0x40] sm:$0xf]
        %v1128 = vld [vmem:[#allocation10 + $0x44] sm:$0xf]
        %v1129 = vld [vmem:[#allocation10 + $0x48] sm:$0xf]
        %v1130 = vld [vmem:[#allocation10 + $0x4c] sm:$0xf]
        %v1131 = vld [vmem:[#allocation10 + $0x50] sm:$0xf]
        %v1132 = vld [vmem:[#allocation10 + $0x54] sm:$0xf]
        %v1133 = vld [vmem:[#allocation10 + $0x58] sm:$0xf]
        %v1134 = vld [vmem:[#allocation10 + $0x5c] sm:$0xf]
        %v1135 = vld [vmem:[#allocation10 + $0x60] sm:$0xf]
        %v1136 = vld [vmem:[#allocation10 + $0x64] sm:$0xf]
        %v1137 = vld [vmem:[#allocation10 + $0x68] sm:$0xf]
        %v1138 = vld [vmem:[#allocation10 + $0x6c] sm:$0xf]
        %v1139 = vld [vmem:[#allocation10 + $0x70] sm:$0xf]
        %v1140 = vld [vmem:[#allocation10 + $0x74] sm:$0xf]
        %v1141 = vld [vmem:[#allocation10 + $0x78] sm:$0xf]
        %v1142 = vld [vmem:[#allocation10 + $0x7c] sm:$0xf]
        %v1143 = vld [vmem:[%s6] sm:$0x1]
        %v1145 = vlaneseq
        %v1146 = vshrl.u32 %v1145, 7
        %v1147 = vsub.s32 0, %v1146
        %v1148 = vrot.slane %v1143, %v1147
        %v1182 = vunpack.c.l.b16 %v1111
        %v1183 = vunpack.c.l.b16 %v1112
        %v1184 = vunpack.c.l.b16 %v1113
        %v1185 = vunpack.c.l.b16 %v1114
        %v1186 = vunpack.c.l.b16 %v1115
        %v1187 = vunpack.c.l.b16 %v1116
        %v1188 = vunpack.c.l.b16 %v1117
        %v1189 = vunpack.c.l.b16 %v1118
        %v1190 = vunpack.c.l.b16 %v1119
        %v1191 = vunpack.c.l.b16 %v1120
        %v1192 = vunpack.c.l.b16 %v1121
        %v1193 = vunpack.c.l.b16 %v1122
        %v1194 = vunpack.c.l.b16 %v1123
        %v1195 = vunpack.c.l.b16 %v1124
        %v1196 = vunpack.c.l.b16 %v1125
        %v1197 = vunpack.c.l.b16 %v1126
        %v1198 = vunpack.c.l.b16 %v1127
        %v1199 = vunpack.c.l.b16 %v1128
        %v1200 = vunpack.c.l.b16 %v1129
        %v1201 = vunpack.c.l.b16 %v1130
        %v1202 = vunpack.c.l.b16 %v1131
        %v1203 = vunpack.c.l.b16 %v1132
        %v1204 = vunpack.c.l.b16 %v1133
        %v1205 = vunpack.c.l.b16 %v1134
        %v1206 = vunpack.c.l.b16 %v1135
        %v1207 = vunpack.c.l.b16 %v1136
        %v1208 = vunpack.c.l.b16 %v1137
        %v1209 = vunpack.c.l.b16 %v1138
        %v1210 = vunpack.c.l.b16 %v1139
        %v1211 = vunpack.c.l.b16 %v1140
        %v1212 = vunpack.c.l.b16 %v1141
        %v1213 = vunpack.c.l.b16 %v1142
        %v1214 = vpack.c.b16 %v1183, %v1182
        %v1215 = vpack.c.b16 %v1185, %v1184
        %v1216 = vpack.c.b16 %v1187, %v1186
        %v1217 = vpack.c.b16 %v1189, %v1188
        %v1218 = vpack.c.b16 %v1191, %v1190
        %v1219 = vpack.c.b16 %v1193, %v1192
        %v1220 = vpack.c.b16 %v1195, %v1194
        %v1221 = vpack.c.b16 %v1197, %v1196
        %v1222 = vpack.c.b16 %v1199, %v1198
        %v1223 = vpack.c.b16 %v1201, %v1200
        %v1224 = vpack.c.b16 %v1203, %v1202
        %v1225 = vpack.c.b16 %v1205, %v1204
        %v1226 = vpack.c.b16 %v1207, %v1206
        %v1227 = vpack.c.b16 %v1209, %v1208
        %v1228 = vpack.c.b16 %v1211, %v1210
        %v1229 = vpack.c.b16 %v1213, %v1212
        %1246 = vmatprep.subr.bf16.mxu0 0
        %1247 = vmatpush1.bf16.msra.mxu0 %v1214
        %1248 = vmatprep.subr.bf16.mxu0 0
        %1249 = vmatpush1.bf16.msra.mxu0 %v1215
        %1250 = vmatprep.subr.bf16.mxu0 0
        %1251 = vmatpush1.bf16.msra.mxu0 %v1216
        %1252 = vmatprep.subr.bf16.mxu0 0
        %1253 = vmatpush1.bf16.msra.mxu0 %v1217
        %1254 = vmatprep.subr.bf16.mxu0 0
        %1255 = vmatpush1.bf16.msra.mxu0 %v1218
        %1256 = vmatprep.subr.bf16.mxu0 0
        %1257 = vmatpush1.bf16.msra.mxu0 %v1219
        %1258 = vmatprep.subr.bf16.mxu0 0
        %1259 = vmatpush1.bf16.msra.mxu0 %v1220
        %1260 = vmatprep.subr.bf16.mxu0 0
        %1261 = vmatpush1.bf16.msra.mxu0 %v1221
        %1262 = vmatprep.subr.bf16.mxu0 0
        %1263 = vmatpush1.bf16.msra.mxu0 %v1222
        %1264 = vmatprep.subr.bf16.mxu0 0
        %1265 = vmatpush1.bf16.msra.mxu0 %v1223
        %1266 = vmatprep.subr.bf16.mxu0 0
        %1267 = vmatpush1.bf16.msra.mxu0 %v1224
        %1268 = vmatprep.subr.bf16.mxu0 0
        %1269 = vmatpush1.bf16.msra.mxu0 %v1225
        %1270 = vmatprep.subr.bf16.mxu0 0
        %1271 = vmatpush1.bf16.msra.mxu0 %v1226
        %1272 = vmatprep.subr.bf16.mxu0 0
        %1273 = vmatpush1.bf16.msra.mxu0 %v1227
        %1274 = vmatprep.subr.bf16.mxu0 0
        %1275 = vmatpush1.bf16.msra.mxu0 %v1228
        %1276 = vmatprep.subr.bf16.mxu0 0
        %1277 = vmatpush1.bf16.msra.mxu0 %v1229
        %1278 = vmatprep.mubr.bf16.mxu0 %v1103
        %1279 = vmatmul.mubr.bf16.gmra.mrb[0].mxu0 %v598
        %v1280 = vpop.f32.mrb[0].mxu0
        %v1281 = vadd.f32 %v1148, %v1280
        %v1282 = vpop.f32.mrb[0].mxu0
        %v1283 = vpop.f32.mrb[0].mxu0
        %v1284 = vadd.f32 %v1148, %v1283
        %v1285 = vpop.f32.mrb[0].mxu0
        %1286 = vmatprep.mubr.bf16.mxu0 %v1104
        %1287 = vmatmul.mubr.bf16.gmra.mrb[0].mxu0 %v599
        %v1288 = vpop.f32.mrb[0].mxu0
        %v1289 = vadd.f32 %v1148, %v1288
        %v1290 = vpop.f32.mrb[0].mxu0
        %v1291 = vpop.f32.mrb[0].mxu0
        %v1292 = vadd.f32 %v1148, %v1291
        %v1293 = vpop.f32.mrb[0].mxu0
        %1294 = vmatprep.mubr.bf16.mxu0 %v1105
        %1295 = vmatmul.mubr.bf16.gmra.mrb[0].mxu0 %v600
        %v1296 = vpop.f32.mrb[0].mxu0
        %v1297 = vadd.f32 %v1148, %v1296
        %v1298 = vpop.f32.mrb[0].mxu0
        %v1299 = vpop.f32.mrb[0].mxu0
        %v1300 = vadd.f32 %v1148, %v1299
        %v1301 = vpop.f32.mrb[0].mxu0
        %1302 = vmatprep.mubr.bf16.mxu0 %v1106
        %1303 = vmatmul.mubr.bf16.gmra.mrb[0].mxu0 %v601
        %v1304 = vpop.f32.mrb[0].mxu0
        %v1305 = vadd.f32 %v1148, %v1304
        %v1306 = vpop.f32.mrb[0].mxu0
        %v1307 = vpop.f32.mrb[0].mxu0
        %v1308 = vadd.f32 %v1148, %v1307
        %v1309 = vpop.f32.mrb[0].mxu0
        %1310 = vmatprep.mubr.bf16.mxu0 %v1107
        %1311 = vmatmul.mubr.bf16.gmra.mrb[0].mxu0 %v602
        %v1312 = vpop.f32.mrb[0].mxu0
        %v1313 = vadd.f32 %v1148, %v1312
        %v1314 = vpop.f32.mrb[0].mxu0
        %v1315 = vpop.f32.mrb[0].mxu0
        %v1316 = vadd.f32 %v1148, %v1315
        %v1317 = vpop.f32.mrb[0].mxu0
        %1318 = vmatprep.mubr.bf16.mxu0 %v1108
        %1319 = vmatmul.mubr.bf16.gmra.mrb[0].mxu0 %v603
        %v1320 = vpop.f32.mrb[0].mxu0
        %v1321 = vadd.f32 %v1148, %v1320
        %v1322 = vpop.f32.mrb[0].mxu0
        %v1323 = vpop.f32.mrb[0].mxu0
        %v1324 = vadd.f32 %v1148, %v1323
        %v1325 = vpop.f32.mrb[0].mxu0
        %1326 = vmatprep.mubr.bf16.mxu0 %v1109
        %1327 = vmatmul.mubr.bf16.gmra.mrb[0].mxu0 %v604
        %v1328 = vpop.f32.mrb[0].mxu0
        %v1329 = vadd.f32 %v1148, %v1328
        %v1330 = vpop.f32.mrb[0].mxu0
        %v1331 = vpop.f32.mrb[0].mxu0
        %v1332 = vadd.f32 %v1148, %v1331
        %v1333 = vpop.f32.mrb[0].mxu0
        %1334 = vmatprep.mubr.bf16.mxu0 %v1110
        %1335 = vmatmul.mubr.bf16.gmra.mrb[0].mxu0 %v605
        %v1336 = vpop.f32.mrb[0].mxu0
        %v1337 = vadd.f32 %v1148, %v1336
        %v1338 = vpop.f32.mrb[0].mxu0
        %v1339 = vpop.f32.mrb[0].mxu0
        %v1340 = vadd.f32 %v1148, %v1339
        %v1341 = vpop.f32.mrb[0].mxu0
        %1342 = vdwg.mxu0
        %v1343 = vld [vmem:[#allocation11] sm:$0xf]
        %v1344 = vld [vmem:[#allocation11 + $0x4] sm:$0xf]
        %v1345 = vld [vmem:[#allocation11 + $0x8] sm:$0xf]
        %v1346 = vld [vmem:[#allocation11 + $0xc] sm:$0xf]
        %v1347 = vld [vmem:[#allocation11 + $0x10] sm:$0xf]
        %v1348 = vld [vmem:[#allocation11 + $0x14] sm:$0xf]
        %v1349 = vld [vmem:[#allocation11 + $0x18] sm:$0xf]
        %v1350 = vld [vmem:[#allocation11 + $0x1c] sm:$0xf]
        %v1351 = vld [vmem:[#allocation11 + $0x20] sm:$0xf]
        %v1352 = vld [vmem:[#allocation11 + $0x24] sm:$0xf]
        %v1353 = vld [vmem:[#allocation11 + $0x28] sm:$0xf]
        %v1354 = vld [vmem:[#allocation11 + $0x2c] sm:$0xf]
        %v1355 = vld [vmem:[#allocation11 + $0x30] sm:$0xf]
        %v1356 = vld [vmem:[#allocation11 + $0x34] sm:$0xf]
        %v1357 = vld [vmem:[#allocation11 + $0x38] sm:$0xf]
        %v1358 = vld [vmem:[#allocation11 + $0x3c] sm:$0xf]
        %v1359 = vld [vmem:[#allocation11 + $0x40] sm:$0xf]
        %v1360 = vld [vmem:[#allocation11 + $0x44] sm:$0xf]
        %v1361 = vld [vmem:[#allocation11 + $0x48] sm:$0xf]
        %v1362 = vld [vmem:[#allocation11 + $0x4c] sm:$0xf]
        %v1363 = vld [vmem:[#allocation11 + $0x50] sm:$0xf]
        %v1364 = vld [vmem:[#allocation11 + $0x54] sm:$0xf]
        %v1365 = vld [vmem:[#allocation11 + $0x58] sm:$0xf]
        %v1366 = vld [vmem:[#allocation11 + $0x5c] sm:$0xf]
        %v1367 = vld [vmem:[#allocation11 + $0x60] sm:$0xf]
        %v1368 = vld [vmem:[#allocation11 + $0x64] sm:$0xf]
        %v1369 = vld [vmem:[#allocation11 + $0x68] sm:$0xf]
        %v1370 = vld [vmem:[#allocation11 + $0x6c] sm:$0xf]
        %v1371 = vld [vmem:[#allocation11 + $0x70] sm:$0xf]
        %v1372 = vld [vmem:[#allocation11 + $0x74] sm:$0xf]
        %v1373 = vld [vmem:[#allocation11 + $0x78] sm:$0xf]
        %v1374 = vld [vmem:[#allocation11 + $0x7c] sm:$0xf]
        %v1375 = vld [vmem:[%s8] sm:$0x1]
        %v1377 = vlaneseq
        %v1378 = vshrl.u32 %v1377, 7
        %v1379 = vsub.s32 0, %v1378
        %v1380 = vrot.slane %v1375, %v1379
        %v1414 = vunpack.c.l.b16 %v1343
        %v1415 = vunpack.c.l.b16 %v1344
        %v1416 = vunpack.c.l.b16 %v1345
        %v1417 = vunpack.c.l.b16 %v1346
        %v1418 = vunpack.c.l.b16 %v1347
        %v1419 = vunpack.c.l.b16 %v1348
        %v1420 = vunpack.c.l.b16 %v1349
        %v1421 = vunpack.c.l.b16 %v1350
        %v1422 = vunpack.c.l.b16 %v1351
        %v1423 = vunpack.c.l.b16 %v1352
        %v1424 = vunpack.c.l.b16 %v1353
        %v1425 = vunpack.c.l.b16 %v1354
        %v1426 = vunpack.c.l.b16 %v1355
        %v1427 = vunpack.c.l.b16 %v1356
        %v1428 = vunpack.c.l.b16 %v1357
        %v1429 = vunpack.c.l.b16 %v1358
        %v1430 = vunpack.c.l.b16 %v1359
        %v1431 = vunpack.c.l.b16 %v1360
        %v1432 = vunpack.c.l.b16 %v1361
        %v1433 = vunpack.c.l.b16 %v1362
        %v1434 = vunpack.c.l.b16 %v1363
        %v1435 = vunpack.c.l.b16 %v1364
        %v1436 = vunpack.c.l.b16 %v1365
        %v1437 = vunpack.c.l.b16 %v1366
        %v1438 = vunpack.c.l.b16 %v1367
        %v1439 = vunpack.c.l.b16 %v1368
        %v1440 = vunpack.c.l.b16 %v1369
        %v1441 = vunpack.c.l.b16 %v1370
        %v1442 = vunpack.c.l.b16 %v1371
        %v1443 = vunpack.c.l.b16 %v1372
        %v1444 = vunpack.c.l.b16 %v1373
        %v1445 = vunpack.c.l.b16 %v1374
        %v1446 = vpack.c.b16 %v1415, %v1414
        %v1447 = vpack.c.b16 %v1417, %v1416
        %v1448 = vpack.c.b16 %v1419, %v1418
        %v1449 = vpack.c.b16 %v1421, %v1420
        %v1450 = vpack.c.b16 %v1423, %v1422
        %v1451 = vpack.c.b16 %v1425, %v1424
        %v1452 = vpack.c.b16 %v1427, %v1426
        %v1453 = vpack.c.b16 %v1429, %v1428
        %v1454 = vpack.c.b16 %v1431, %v1430
        %v1455 = vpack.c.b16 %v1433, %v1432
        %v1456 = vpack.c.b16 %v1435, %v1434
        %v1457 = vpack.c.b16 %v1437, %v1436
        %v1458 = vpack.c.b16 %v1439, %v1438
        %v1459 = vpack.c.b16 %v1441, %v1440
        %v1460 = vpack.c.b16 %v1443, %v1442
        %v1461 = vpack.c.b16 %v1445, %v1444
        %1478 = vmatprep.subr.bf16.mxu0 0
        %1479 = vmatpush1.bf16.msra.mxu0 %v1446
        %1480 = vmatprep.subr.bf16.mxu0 0
        %1481 = vmatpush1.bf16.msra.mxu0 %v1447
        %1482 = vmatprep.subr.bf16.mxu0 0
        %1483 = vmatpush1.bf16.msra.mxu0 %v1448
        %1484 = vmatprep.subr.bf16.mxu0 0
        %1485 = vmatpush1.bf16.msra.mxu0 %v1449
        %1486 = vmatprep.subr.bf16.mxu0 0
        %1487 = vmatpush1.bf16.msra.mxu0 %v1450
        %1488 = vmatprep.subr.bf16.mxu0 0
        %1489 = vmatpush1.bf16.msra.mxu0 %v1451
        %1490 = vmatprep.subr.bf16.mxu0 0
        %1491 = vmatpush1.bf16.msra.mxu0 %v1452
        %1492 = vmatprep.subr.bf16.mxu0 0
        %1493 = vmatpush1.bf16.msra.mxu0 %v1453
        %1494 = vmatprep.subr.bf16.mxu0 0
        %1495 = vmatpush1.bf16.msra.mxu0 %v1454
        %1496 = vmatprep.subr.bf16.mxu0 0
        %1497 = vmatpush1.bf16.msra.mxu0 %v1455
        %1498 = vmatprep.subr.bf16.mxu0 0
        %1499 = vmatpush1.bf16.msra.mxu0 %v1456
        %1500 = vmatprep.subr.bf16.mxu0 0
        %1501 = vmatpush1.bf16.msra.mxu0 %v1457
        %1502 = vmatprep.subr.bf16.mxu0 0
        %1503 = vmatpush1.bf16.msra.mxu0 %v1458
        %1504 = vmatprep.subr.bf16.mxu0 0
        %1505 = vmatpush1.bf16.msra.mxu0 %v1459
        %1506 = vmatprep.subr.bf16.mxu0 0
        %1507 = vmatpush1.bf16.msra.mxu0 %v1460
        %1508 = vmatprep.subr.bf16.mxu0 0
        %1509 = vmatpush1.bf16.msra.mxu0 %v1461
        %1510 = vmatprep.mubr.bf16.mxu0 %v1103
        %1511 = vmatmul.mubr.bf16.gmra.mrb[0].mxu0 %v646
        %v1512 = vpop.f32.mrb[0].mxu0
        %v1513 = vadd.f32 %v1380, %v1512
        %v1514 = vpop.f32.mrb[0].mxu0
        %v1515 = vpop.f32.mrb[0].mxu0
        %v1516 = vadd.f32 %v1380, %v1515
        %v1517 = vpop.f32.mrb[0].mxu0
        %1518 = vmatprep.mubr.bf16.mxu0 %v1104
        %1519 = vmatmul.mubr.bf16.gmra.mrb[0].mxu0 %v647
        %v1520 = vpop.f32.mrb[0].mxu0
        %v1521 = vadd.f32 %v1380, %v1520
        %v1522 = vpop.f32.mrb[0].mxu0
        %v1523 = vpop.f32.mrb[0].mxu0
        %v1524 = vadd.f32 %v1380, %v1523
        %v1525 = vpop.f32.mrb[0].mxu0
        %1526 = vmatprep.mubr.bf16.mxu0 %v1105
        %1527 = vmatmul.mubr.bf16.gmra.mrb[0].mxu0 %v648
        %v1528 = vpop.f32.mrb[0].mxu0
        %v1529 = vadd.f32 %v1380, %v1528
        %v1530 = vpop.f32.mrb[0].mxu0
        %v1531 = vpop.f32.mrb[0].mxu0
        %v1532 = vadd.f32 %v1380, %v1531
        %v1533 = vpop.f32.mrb[0].mxu0
        %1534 = vmatprep.mubr.bf16.mxu0 %v1106
        %1535 = vmatmul.mubr.bf16.gmra.mrb[0].mxu0 %v649
        %v1536 = vpop.f32.mrb[0].mxu0
        %v1537 = vadd.f32 %v1380, %v1536
        %v1538 = vpop.f32.mrb[0].mxu0
        %v1539 = vpop.f32.mrb[0].mxu0
        %v1540 = vadd.f32 %v1380, %v1539
        %v1541 = vpop.f32.mrb[0].mxu0
        %1542 = vmatprep.mubr.bf16.mxu0 %v1107
        %1543 = vmatmul.mubr.bf16.gmra.mrb[0].mxu0 %v650
        %v1544 = vpop.f32.mrb[0].mxu0
        %v1545 = vadd.f32 %v1380, %v1544
        %v1546 = vpop.f32.mrb[0].mxu0
        %v1547 = vpop.f32.mrb[0].mxu0
        %v1548 = vadd.f32 %v1380, %v1547
        %v1549 = vpop.f32.mrb[0].mxu0
        %1550 = vmatprep.mubr.bf16.mxu0 %v1108
        %1551 = vmatmul.mubr.bf16.gmra.mrb[0].mxu0 %v651
        %v1552 = vpop.f32.mrb[0].mxu0
        %v1553 = vadd.f32 %v1380, %v1552
        %v1554 = vpop.f32.mrb[0].mxu0
        %v1555 = vpop.f32.mrb[0].mxu0
        %v1556 = vadd.f32 %v1380, %v1555
        %v1557 = vpop.f32.mrb[0].mxu0
        %1558 = vmatprep.mubr.bf16.mxu0 %v1109
        %1559 = vmatmul.mubr.bf16.gmra.mrb[0].mxu0 %v652
        %v1560 = vpop.f32.mrb[0].mxu0
        %v1561 = vadd.f32 %v1380, %v1560
        %v1562 = vpop.f32.mrb[0].mxu0
        %v1563 = vpop.f32.mrb[0].mxu0
        %v1564 = vadd.f32 %v1380, %v1563
        %v1565 = vpop.f32.mrb[0].mxu0
        %1566 = vmatprep.mubr.bf16.mxu0 %v1110
        %1567 = vmatmul.mubr.bf16.gmra.mrb[0].mxu0 %v653
        %v1568 = vpop.f32.mrb[0].mxu0
        %v1569 = vadd.f32 %v1380, %v1568
        %v1570 = vpop.f32.mrb[0].mxu0
        %v1571 = vpop.f32.mrb[0].mxu0
        %v1572 = vadd.f32 %v1380, %v1571
        %v1573 = vpop.f32.mrb[0].mxu0
        %1574 = vdwg.mxu0
        %1575 = vst [vmem:[%s499] sm:$0xff] %v1041
        %1576 = vst [vmem:[%s499 + $0x8] sm:$0xff] %v1044
        %1577 = vst [vmem:[%s499 + $0x10] sm:$0xff] %v1049
        %1578 = vst [vmem:[%s499 + $0x18] sm:$0xff] %v1052
        %1579 = vst [vmem:[%s499 + $0x20] sm:$0xff] %v1057
        %1580 = vst [vmem:[%s499 + $0x28] sm:$0xff] %v1060
        %1581 = vst [vmem:[%s499 + $0x30] sm:$0xff] %v1065
        %1582 = vst [vmem:[%s499 + $0x38] sm:$0xff] %v1068
        %1583 = vst [vmem:[%s499 + $0x40] sm:$0xff] %v1073
        %1584 = vst [vmem:[%s499 + $0x48] sm:$0xff] %v1076
        %1585 = vst [vmem:[%s499 + $0x50] sm:$0xff] %v1081
        %1586 = vst [vmem:[%s499 + $0x58] sm:$0xff] %v1084
        %1587 = vst [vmem:[%s499 + $0x60] sm:$0xff] %v1089
        %1588 = vst [vmem:[%s499 + $0x68] sm:$0xff] %v1092
        %1589 = vst [vmem:[%s499 + $0x70] sm:$0xff] %v1097
        %1590 = vst [vmem:[%s499 + $0x78] sm:$0xff] %v1100
        %v1591 = vmul.f32 %v1281, %v1513
        %v1592 = vmul.f32 %v1284, %v1516
        %v1593 = vmul.f32 %v1289, %v1521
        %v1594 = vmul.f32 %v1292, %v1524
        %v1595 = vmul.f32 %v1297, %v1529
        %v1596 = vmul.f32 %v1300, %v1532
        %v1597 = vmul.f32 %v1305, %v1537
        %v1598 = vmul.f32 %v1308, %v1540
        %v1599 = vmul.f32 %v1313, %v1545
        %v1600 = vmul.f32 %v1316, %v1548
        %v1601 = vmul.f32 %v1321, %v1553
        %v1602 = vmul.f32 %v1324, %v1556
        %v1603 = vmul.f32 %v1329, %v1561
        %v1604 = vmul.f32 %v1332, %v1564
        %v1605 = vmul.f32 %v1337, %v1569
        %v1606 = vmul.f32 %v1340, %v1572
        %1607 = vadd.xlane.f32.xlu0 %v1591
        %v1608 = vpop.xlane.xlu0 %1607
        %1609 = vadd.xlane.f32.xlu0 %v1592
        %v1610 = vpop.xlane.xlu0 %1609
        %1611 = vadd.xlane.f32.xlu0 %v1593
        %v1612 = vpop.xlane.xlu0 %1611
        %1613 = vadd.xlane.f32.xlu0 %v1594
        %v1614 = vpop.xlane.xlu0 %1613
        %1615 = vadd.xlane.f32.xlu0 %v1595
        %v1616 = vpop.xlane.xlu0 %1615
        %1617 = vadd.xlane.f32.xlu0 %v1596
        %v1618 = vpop.xlane.xlu0 %1617
        %1619 = vadd.xlane.f32.xlu0 %v1597
        %v1620 = vpop.xlane.xlu0 %1619
        %1621 = vadd.xlane.f32.xlu0 %v1598
        %v1622 = vpop.xlane.xlu0 %1621
        %1623 = vadd.xlane.f32.xlu0 %v1599
        %v1624 = vpop.xlane.xlu0 %1623
        %1625 = vadd.xlane.f32.xlu0 %v1600
        %v1626 = vpop.xlane.xlu0 %1625
        %1627 = vadd.xlane.f32.xlu0 %v1601
        %v1628 = vpop.xlane.xlu0 %1627
        %1629 = vadd.xlane.f32.xlu0 %v1602
        %v1630 = vpop.xlane.xlu0 %1629
        %1631 = vadd.xlane.f32.xlu0 %v1603
        %v1632 = vpop.xlane.xlu0 %1631
        %1633 = vadd.xlane.f32.xlu0 %v1604
        %v1634 = vpop.xlane.xlu0 %1633
        %1635 = vadd.xlane.f32.xlu0 %v1605
        %v1636 = vpop.xlane.xlu0 %1635
        %1637 = vadd.xlane.f32.xlu0 %v1606
        %v1638 = vpop.xlane.xlu0 %1637
        %v1639 = vmul.f32 %v1608, 0.088388346
        %v1640 = vmul.f32 %v1610, 0.088388346
        %v1641 = vmul.f32 %v1612, 0.088388346
        %v1642 = vmul.f32 %v1614, 0.088388346
        %v1643 = vmul.f32 %v1616, 0.088388346
        %v1644 = vmul.f32 %v1618, 0.088388346
        %v1645 = vmul.f32 %v1620, 0.088388346
        %v1646 = vmul.f32 %v1622, 0.088388346
        %v1647 = vmul.f32 %v1624, 0.088388346
        %v1648 = vmul.f32 %v1626, 0.088388346
        %v1649 = vmul.f32 %v1628, 0.088388346
        %v1650 = vmul.f32 %v1630, 0.088388346
        %v1651 = vmul.f32 %v1632, 0.088388346
        %v1652 = vmul.f32 %v1634, 0.088388346
        %v1653 = vmul.f32 %v1636, 0.088388346
        %v1654 = vmul.f32 %v1638, 0.088388346
        %vm1655 = vcmask 7168
        %1656 = vst.msk [vmem:[%s515] sm:$0xff] %vm1655, %v1639
        %1657 = vst.msk [vmem:[%s515 + $0x8] sm:$0xff] %vm1655, %v1640
        %1658 = vst.msk [vmem:[%s515 + $0x10] sm:$0xff] %vm1655, %v1641
        %1659 = vst.msk [vmem:[%s515 + $0x18] sm:$0xff] %vm1655, %v1642
        %1660 = vst.msk [vmem:[%s515 + $0x20] sm:$0xff] %vm1655, %v1643
        %1661 = vst.msk [vmem:[%s515 + $0x28] sm:$0xff] %vm1655, %v1644
        %1662 = vst.msk [vmem:[%s515 + $0x30] sm:$0xff] %vm1655, %v1645
        %1663 = vst.msk [vmem:[%s515 + $0x38] sm:$0xff] %vm1655, %v1646
        %1664 = vst.msk [vmem:[%s515 + $0x40] sm:$0xff] %vm1655, %v1647
        %1665 = vst.msk [vmem:[%s515 + $0x48] sm:$0xff] %vm1655, %v1648
        %1666 = vst.msk [vmem:[%s515 + $0x50] sm:$0xff] %vm1655, %v1649
        %1667 = vst.msk [vmem:[%s515 + $0x58] sm:$0xff] %vm1655, %v1650
        %1668 = vst.msk [vmem:[%s515 + $0x60] sm:$0xff] %vm1655, %v1651
        %1669 = vst.msk [vmem:[%s515 + $0x68] sm:$0xff] %vm1655, %v1652
        %1670 = vst.msk [vmem:[%s515 + $0x70] sm:$0xff] %vm1655, %v1653
        %1671 = vst.msk [vmem:[%s515 + $0x78] sm:$0xff] %vm1655, %v1654
        %s1672 = sand.u32 %s245, 1
        %s1673 = scalar_lea.sflag [#allocation4], %s1672
        %s1674 = sand.u32 %s245, 1
        %s1675 = smul.addr %s1674, 128
        %s1676 = scalar_lea.vmem [#allocation13], %s1675
        %s1677 = smul.u32 16, %s33
        %p1678 = scmp.lt.s32.totalorder %s1677, 47
        %s1679 = scalar_select %p1678, %s1677, 47
        %s1680 = smul.addr %s1679, 8
        %s1681 = scalar_lea.vmem %s10, %s1680
        // Predicated region
        $region81: #{tpu_custom_call.1} parent=55 // pred_check
          %p1682 = pneg %p255
        $region82: #{tpu_custom_call.1} parent=55 // pred_check_branch
          %1684 = sbr.rel (%p1682) target = $region84
        $region83: #{tpu_custom_call.1} parent=55 // pred_region
          %s1685 = smul.u32 16, %s33
          %s1687 = ssub.s32 2048, 2048
          %1688 = vsyncadd %s1673, %s1687
          %s1689 = smul.addr %s1685, 128
          %s1690 = scalar_lea.hbm %s9, %s1689
          %s1691 = sshll.u32 %s1676, 4
          %s1692 = int_to_ptr.vmem [resolvable:$true] %s1691
          %1697 = dma.vmem_to_hbm [thread:$0]  %s1692, 2048, %s1690, %s1673, 128, 128, 8
        $region84: #{tpu_custom_call.1} parent=55 // pred_fallthru
          _
        // Predicated region
        $region85: #{tpu_custom_call.1} parent=55 // pred_check
          %p1698 = pneg %p281
        $region86: #{tpu_custom_call.1} parent=55 // pred_check_branch
          %1700 = sbr.rel (%p1698) target = $region88
        $region87: #{tpu_custom_call.1} parent=55 // pred_region
          %s1701 = smul.u32 16, %s33
        $region88: #{tpu_custom_call.1} parent=55 // pred_fallthru
          _
      $region56: #{tpu_custom_call.1} parent=5 // pred_fallthru
        _
      %p1702 = scmp.le.s32.totalorder 2, %s28
      // Predicated region
      $region89: #{tpu_custom_call.1} parent=5 // pred_check
        %p1703 = pneg %p1702
      $region90: #{tpu_custom_call.1} parent=5 // pred_check_branch
        %1705 = sbr.rel (%p1703) target = $region92
      $region91: #{tpu_custom_call.1} parent=5 // pred_region
        %s1706 = ssub.s32 %s28, 2
        // Predicated region
        $region93: #{tpu_custom_call.1} parent=91 // pred_check
          %p1707 = pneg %p261
        $region94: #{tpu_custom_call.1} parent=91 // pred_check_branch
          %1709 = sbr.rel (%p1707) target = $region96
        $region95: #{tpu_custom_call.1} parent=91 // pred_region
          %s1710 = sand.u32 %s246, 1
          %s1711 = scalar_lea.sflag [#allocation4], %s1710
          %s1712 = sand.u32 %s246, 1
          %s1713 = smul.addr %s1712, 128
          %s1714 = scalar_lea.vmem [#allocation13], %s1713
          %1715 = dma.done %s1711, 2048
        $region96: #{tpu_custom_call.1} parent=91 // pred_fallthru
          _
        // Predicated region
        $region97: #{tpu_custom_call.1} parent=91 // pred_check
          %p1716 = pneg %p287
        $region98: #{tpu_custom_call.1} parent=91 // pred_check_branch
          %1718 = sbr.rel (%p1716) target = $region100
        $region99: #{tpu_custom_call.1} parent=91 // pred_region
          %s1719 = smul.u32 16, %s34
          %p1720 = scmp.lt.s32.totalorder %s1719, 47
          %s1721 = scalar_select %p1720, %s1719, 47
          %s1722 = smul.addr %s1721, 8
          %s1723 = scalar_lea.vmem %s10, %s1722
        $region100: #{tpu_custom_call.1} parent=91 // pred_fallthru
          _
      $region92: #{tpu_custom_call.1} parent=5 // pred_fallthru
        _
    $region6: #{tpu_custom_call.1} parent=1 // loop_footer
      %s32 = sadd.s32 1, %s28
    $region7: #{tpu_custom_call.1} parent=1 // loop_footer_branch
      %27 = sbr.rel target = $region3
    $region8: #{tpu_custom_call.1} parent=1 // loop_exit
      _
    %1724 = vsyncpa [#allocation3], 1
    %s1725 = scalar_lea.sflag [#allocation3], 1
    %1726 = vsyncpa %s1725, 1
    %1727 = vsyncpa [#allocation6], 1
    %s1728 = scalar_lea.sflag [#allocation6], 1
    %1729 = vsyncpa %s1728, 1
    %1730 = vsyncpa [#allocation9], 1
    %1731 = vsyncpa [#allocation12], 1
    %1732 = vsyncpa [#allocation4], 1
    %s1733 = scalar_lea.sflag [#allocation4], 1
    %1734 = vsyncpa %s1733, 1

</llo_original>
